<compile_context>
chip_gen: v7x
topology: tpu7x:2x2x1
jax: 0.10.0
libtpu: 0.0.40
codegen_flags: <defaults>
</compile_context>

<pallas_src>
import functools

import jax
import jax.numpy as jnp
from jax.experimental import pallas as pl
from jax.experimental.pallas import tpu as pltpu


def _fused_conv_kernel(x_ref, w_ref, o_ref, pad_ref, *, Hh, Wh, Cin4, Cout4):
    """One image per grid step.

    x_ref:   (1, Hh, Wh, Cin4)    space-to-depth input tile (VMEM)
    w_ref:   (3, 3, Cin4, Cout4)  fused conv+unshuffle weights (grid-invariant)
    o_ref:   (1, Hh, Wh, Cout4)   fused output (PixelUnshuffle already applied)
    pad_ref: (Hh+2, Wh+2, Cin4)   VMEM scratch holding the zero-halo'd input
    """
    dt = x_ref.dtype
    # Zero only the 1-superpixel halo; interior is fully overwritten below.
    zrow = jnp.zeros((1, Wh + 2, Cin4), dt)
    zcol = jnp.zeros((Hh + 2, 1, Cin4), dt)
    pad_ref[0:1, :, :] = zrow
    pad_ref[Hh + 1:Hh + 2, :, :] = zrow
    pad_ref[:, 0:1, :] = zcol
    pad_ref[:, Wh + 1:Wh + 2, :] = zcol
    pad_ref[1:Hh + 1, 1:Wh + 1, :] = x_ref[0]

    # f32 accumulator: Hh*Wh*Cout4*4B (2 KiB at demo shapes) -> stays register/compiler
    # managed; per-image tiling keeps it well under the vreg file.
    acc = jnp.zeros((Hh * Wh, Cout4), jnp.float32)
    for gy in range(3):                              # 3x3 taps on the superpixel grid
        # Load the row strip once per tap-row: axis 0 is the untiled dim -> aligned slice.
        strip = pad_ref[gy:gy + Hh, :, :]            # (Hh, Wh+2, Cin4)
        for gx in range(3):
            xs = strip[:, gx:gx + Wh, :]             # (Hh, Wh, Cin4) value slice
            acc = acc + jnp.dot(xs.reshape(Hh * Wh, Cin4), w_ref[gy, gx],
                                preferred_element_type=jnp.float32)
    o_ref[0] = acc.reshape(Hh, Wh, Cout4).astype(o_ref.dtype)


def _fused_conv_pallas(x_sp, wb):
    """x_sp: (N, Hh, Wh, 4*Cin); wb: (3, 3, 4*Cin, 4*Cout) -> (N, Hh, Wh, 4*Cout)."""
    N, Hh, Wh, Cin4 = x_sp.shape
    Cout4 = wb.shape[-1]
    kernel = functools.partial(_fused_conv_kernel, Hh=Hh, Wh=Wh, Cin4=Cin4, Cout4=Cout4)
    return pl.pallas_call(
        kernel,
        out_shape=jax.ShapeDtypeStruct((N, Hh, Wh, Cout4), x_sp.dtype),
        grid_spec=pltpu.PrefetchScalarGridSpec(
            num_scalar_prefetch=0,
            grid=(N,),
            in_specs=[
                pl.BlockSpec((1, Hh, Wh, Cin4), lambda n: (n, 0, 0, 0)),
                pl.BlockSpec((3, 3, Cin4, Cout4), lambda n: (0, 0, 0, 0)),
            ],
            out_specs=pl.BlockSpec((1, Hh, Wh, Cout4), lambda n: (n, 0, 0, 0)),
            scratch_shapes=[pltpu.VMEM((Hh + 2, Wh + 2, Cin4), x_sp.dtype)],
        ),
        compiler_params=pltpu.CompilerParams(
            dimension_semantics=("parallel",),
            vmem_limit_bytes=32 * 1024 * 1024,
        ),
    )(x_sp, wb)


def _build_fused_weight(w_oihw):
    """(Cout, Cin, 3, 3) conv weight -> (3, 3, 4*Cin, 4*Cout) fused conv+unshuffle weight.

    Input channel index  k = (ay*2 + ax)*Cin + cin    (space-to-depth order)
    Output channel index j = c*4 + dy*2 + dx          (PixelUnshuffle(2) order)
    WB[gy+1, gx+1][k, j] = w[c, cin, 2*gy + ay - dy + 1, 2*gx + ax - dx + 1]  (0 if OOB)
    """
    Cout, Cin, _, _ = w_oihw.shape
    w_iokk = jnp.transpose(w_oihw, (1, 0, 2, 3))            # (Cin, Cout, 3, 3)
    taps = []
    for gy in (-1, 0, 1):
        row = []
        for gx in (-1, 0, 1):
            t = jnp.zeros((2, 2, Cin, Cout, 2, 2), w_oihw.dtype)   # (ay, ax, cin, c, dy, dx)
            for ay in range(2):
                for ax in range(2):
                    for dy in range(2):
                        for dx in range(2):
                            ky = 2 * gy + ay - dy + 1
                            kx = 2 * gx + ax - dx + 1
                            if 0 <= ky <= 2 and 0 <= kx <= 2:
                                t = t.at[ay, ax, :, :, dy, dx].set(w_iokk[:, :, ky, kx])
            row.append(t.reshape(4 * Cin, 4 * Cout))
        taps.append(jnp.stack(row, axis=0))
    return jnp.stack(taps, axis=0)                          # (3, 3, 4*Cin, 4*Cout)


def downsample(x_nchw, w_oihw):
    """UIETPA DownSample forward: Conv2d(C, C//2, 3, pad=1, no bias) + PixelUnshuffle(2).

    x: (N, C, H, W), w: (C//2, C, 3, 3) -> (N, 2*C, H//2, W//2)
    """
    N, C, H, W = x_nchw.shape
    Hh, Wh = H // 2, W // 2
    # Single input copy: NCHW -> space-to-depth(2) channels-last layout (N, Hh, Wh, 4*C).
    x_sp = jnp.transpose(x_nchw.reshape(N, C, Hh, 2, Wh, 2),
                         (0, 2, 4, 3, 5, 1)).reshape(N, Hh, Wh, 4 * C)
    wb = _build_fused_weight(w_oihw)
    y = _fused_conv_pallas(x_sp, wb)                 # (N, Hh, Wh, 2*C), unshuffle fused
    return jnp.transpose(y, (0, 3, 1, 2))            # single output copy -> NCHW


def _pixel_unshuffle_nchw_ref(x, r=2):
    N, C, H, W = x.shape
    x = x.reshape(N, C, H // r, r, W // r, r)
    x = jnp.transpose(x, (0, 1, 3, 5, 2, 4))
    return x.reshape(N, C * r * r, H // r, W // r)


if __name__ == "__main__":
    key = jax.random.PRNGKey(0)
    kx, kw = jax.random.split(key)

    N, C, H, W = 2, 4, 16, 16
    x = jax.random.normal(kx, (N, C, H, W), dtype=jnp.float32)
    # Conv2d(C, C//2, 3, padding=1, bias=False) weight: (C//2, C, 3, 3)
    fan_in = C * 3 * 3
    bound = 1.0 / (fan_in ** 0.5)
    w = jax.random.uniform(kw, (C // 2, C, 3, 3), jnp.float32, -bound, bound)

    out = jax.jit(downsample)(x, w)
    out = jax.block_until_ready(out)
    assert out.shape == (N, 2 * C, H // 2, W // 2), out.shape

    # Reference: f32-exact XLA conv + PixelUnshuffle(2).
    ref_conv = jax.lax.conv_general_dilated(
        x, w, window_strides=(1, 1), padding=((1, 1), (1, 1)),
        dimension_numbers=("NCHW", "OIHW", "NCHW"),
        precision=jax.lax.Precision.HIGHEST)
    ref = _pixel_unshuffle_nchw_ref(ref_conv, 2)
    assert jnp.allclose(out, ref, atol=1e-4, rtol=1e-4), \
        float(jnp.max(jnp.abs(out - ref)))

    print("KERNEL_OK")
</pallas_src>

<mosaic_0001>
module attributes {stable_mosaic.version = 11 : i64} {
  func.func @_fused_conv_kernel(%arg0: i32, %arg1: memref<1x8x8x16xf32, #tpu.memory_space<vmem>>, %arg2: memref<3x3x16x8xf32, #tpu.memory_space<vmem>>, %arg3: memref<1x8x8x8xf32, #tpu.memory_space<vmem>>, %arg4: memref<10x10x16xf32, #tpu.memory_space<vmem>>) attributes {dimension_semantics = [#tpu.dimension_semantics<parallel>], iteration_bounds = array<i64: 2>, scalar_prefetch = 0 : i64, scratch_operands = 1 : i64, tpu.core_type = #tpu.core_type<tc>, window_params = [{transform_indices = @transform_0, window_bounds = array<i64: 1, 8, 8, 16>}, {pipeline_mode = #tpu.pipeline_mode<synchronous>, transform_indices = @transform_1, window_bounds = array<i64: 3, 3, 16, 8>}, {transform_indices = @transform_2, window_bounds = array<i64: 1, 8, 8, 8>}]} {
    %cst = arith.constant 0.000000e+00 : f32
    %0 = vector.broadcast %cst : f32 to vector<1x10x16xf32>
    %cst_0 = arith.constant 0.000000e+00 : f32
    %1 = vector.broadcast %cst_0 : f32 to vector<10x1x16xf32>
    %c0 = arith.constant 0 : index
    %c0_1 = arith.constant 0 : index
    %c0_2 = arith.constant 0 : index
    %2 = vector.load %arg4[%c0, %c0_1, %c0_2] : memref<10x10x16xf32, #tpu.memory_space<vmem>>, vector<1x10x16xf32>
    tpu.vector_store %arg4[%c0, %c0_1, %c0_2], %0 {strides = array<i32>} : memref<10x10x16xf32, #tpu.memory_space<vmem>>, vector<1x10x16xf32>,
    %c9 = arith.constant 9 : index
    %c0_3 = arith.constant 0 : index
    %c0_4 = arith.constant 0 : index
    %3 = vector.load %arg4[%c9, %c0_3, %c0_4] : memref<10x10x16xf32, #tpu.memory_space<vmem>>, vector<1x10x16xf32>
    tpu.vector_store %arg4[%c9, %c0_3, %c0_4], %0 {strides = array<i32>} : memref<10x10x16xf32, #tpu.memory_space<vmem>>, vector<1x10x16xf32>,
    %c0_5 = arith.constant 0 : index
    %c0_6 = arith.constant 0 : index
    %c0_7 = arith.constant 0 : index
    %4 = vector.load %arg4[%c0_5, %c0_6, %c0_7] : memref<10x10x16xf32, #tpu.memory_space<vmem>>, vector<10x1x16xf32>
    tpu.vector_store %arg4[%c0_5, %c0_6, %c0_7], %1 {strides = array<i32>} : memref<10x10x16xf32, #tpu.memory_space<vmem>>, vector<10x1x16xf32>,
    %c0_8 = arith.constant 0 : index
    %c9_9 = arith.constant 9 : index
    %c0_10 = arith.constant 0 : index
    %5 = vector.load %arg4[%c0_8, %c9_9, %c0_10] : memref<10x10x16xf32, #tpu.memory_space<vmem>>, vector<10x1x16xf32>
    tpu.vector_store %arg4[%c0_8, %c9_9, %c0_10], %1 {strides = array<i32>} : memref<10x10x16xf32, #tpu.memory_space<vmem>>, vector<10x1x16xf32>,
    %c0_11 = arith.constant 0 : index
    %c0_12 = arith.constant 0 : index
    %c0_13 = arith.constant 0 : index
    %c0_14 = arith.constant 0 : index
    %6 = vector.load %arg1[%c0_11, %c0_12, %c0_13, %c0_14] : memref<1x8x8x16xf32, #tpu.memory_space<vmem>>, vector<1x8x8x16xf32>
    %7 = vector.shape_cast %6 : vector<1x8x8x16xf32> to vector<8x8x16xf32>
    %c1 = arith.constant 1 : index
    %c1_15 = arith.constant 1 : index
    %c0_16 = arith.constant 0 : index
    %8 = vector.load %arg4[%c1, %c1_15, %c0_16] : memref<10x10x16xf32, #tpu.memory_space<vmem>>, vector<8x8x16xf32>
    tpu.vector_store %arg4[%c1, %c1_15, %c0_16], %7 {strides = array<i32>} : memref<10x10x16xf32, #tpu.memory_space<vmem>>, vector<8x8x16xf32>,
    %cst_17 = arith.constant 0.000000e+00 : f32
    %9 = vector.broadcast %cst_17 : f32 to vector<64x8xf32>
    %c0_18 = arith.constant 0 : index
    %c0_19 = arith.constant 0 : index
    %c0_20 = arith.constant 0 : index
    %10 = vector.load %arg4[%c0_18, %c0_19, %c0_20] : memref<10x10x16xf32, #tpu.memory_space<vmem>>, vector<8x10x16xf32>
    %11 = vector.extract_strided_slice %10 {offsets = [0, 0, 0], sizes = [8, 8, 16], strides = [1, 1, 1]} : vector<8x10x16xf32> to vector<8x8x16xf32>
    %12 = vector.shape_cast %11 : vector<8x8x16xf32> to vector<64x16xf32>
    %c0_21 = arith.constant 0 : index
    %c0_22 = arith.constant 0 : index
    %c0_23 = arith.constant 0 : index
    %c0_24 = arith.constant 0 : index
    %13 = vector.load %arg2[%c0_21, %c0_22, %c0_23, %c0_24] : memref<3x3x16x8xf32, #tpu.memory_space<vmem>>, vector<1x1x16x8xf32>
    %14 = vector.shape_cast %13 : vector<1x1x16x8xf32> to vector<16x8xf32>
    %cst_25 = arith.constant dense<0.000000e+00> : vector<64x8xf32>
    %15 = tpu.matmul %12, %14, %cst_25 {dimension_numbers = #tpu.dot_dimension_numbers<[1], [0], [0], [1], [0, 0, 1, 1], [], []>} : vector<64x16xf32>, vector<16x8xf32>, vector<64x8xf32> -> vector<64x8xf32>
    %16 = arith.addf %9, %15 : vector<64x8xf32>
    %17 = vector.extract_strided_slice %10 {offsets = [0, 1, 0], sizes = [8, 8, 16], strides = [1, 1, 1]} : vector<8x10x16xf32> to vector<8x8x16xf32>
    %18 = vector.shape_cast %17 : vector<8x8x16xf32> to vector<64x16xf32>
    %c0_26 = arith.constant 0 : index
    %c1_27 = arith.constant 1 : index
    %c0_28 = arith.constant 0 : index
    %c0_29 = arith.constant 0 : index
    %19 = vector.load %arg2[%c0_26, %c1_27, %c0_28, %c0_29] : memref<3x3x16x8xf32, #tpu.memory_space<vmem>>, vector<1x1x16x8xf32>
    %20 = vector.shape_cast %19 : vector<1x1x16x8xf32> to vector<16x8xf32>
    %cst_30 = arith.constant dense<0.000000e+00> : vector<64x8xf32>
    %21 = tpu.matmul %18, %20, %cst_30 {dimension_numbers = #tpu.dot_dimension_numbers<[1], [0], [0], [1], [0, 0, 1, 1], [], []>} : vector<64x16xf32>, vector<16x8xf32>, vector<64x8xf32> -> vector<64x8xf32>
    %22 = arith.addf %16, %21 : vector<64x8xf32>
    %23 = vector.extract_strided_slice %10 {offsets = [0, 2, 0], sizes = [8, 8, 16], strides = [1, 1, 1]} : vector<8x10x16xf32> to vector<8x8x16xf32>
    %24 = vector.shape_cast %23 : vector<8x8x16xf32> to vector<64x16xf32>
    %c0_31 = arith.constant 0 : index
    %c2 = arith.constant 2 : index
    %c0_32 = arith.constant 0 : index
    %c0_33 = arith.constant 0 : index
    %25 = vector.load %arg2[%c0_31, %c2, %c0_32, %c0_33] : memref<3x3x16x8xf32, #tpu.memory_space<vmem>>, vector<1x1x16x8xf32>
    %26 = vector.shape_cast %25 : vector<1x1x16x8xf32> to vector<16x8xf32>
    %cst_34 = arith.constant dense<0.000000e+00> : vector<64x8xf32>
    %27 = tpu.matmul %24, %26, %cst_34 {dimension_numbers = #tpu.dot_dimension_numbers<[1], [0], [0], [1], [0, 0, 1, 1], [], []>} : vector<64x16xf32>, vector<16x8xf32>, vector<64x8xf32> -> vector<64x8xf32>
    %28 = arith.addf %22, %27 : vector<64x8xf32>
    %c1_35 = arith.constant 1 : index
    %c0_36 = arith.constant 0 : index
    %c0_37 = arith.constant 0 : index
    %29 = vector.load %arg4[%c1_35, %c0_36, %c0_37] : memref<10x10x16xf32, #tpu.memory_space<vmem>>, vector<8x10x16xf32>
    %30 = vector.extract_strided_slice %29 {offsets = [0, 0, 0], sizes = [8, 8, 16], strides = [1, 1, 1]} : vector<8x10x16xf32> to vector<8x8x16xf32>
    %31 = vector.shape_cast %30 : vector<8x8x16xf32> to vector<64x16xf32>
    %c1_38 = arith.constant 1 : index
    %c0_39 = arith.constant 0 : index
    %c0_40 = arith.constant 0 : index
    %c0_41 = arith.constant 0 : index
    %32 = vector.load %arg2[%c1_38, %c0_39, %c0_40, %c0_41] : memref<3x3x16x8xf32, #tpu.memory_space<vmem>>, vector<1x1x16x8xf32>
    %33 = vector.shape_cast %32 : vector<1x1x16x8xf32> to vector<16x8xf32>
    %cst_42 = arith.constant dense<0.000000e+00> : vector<64x8xf32>
    %34 = tpu.matmul %31, %33, %cst_42 {dimension_numbers = #tpu.dot_dimension_numbers<[1], [0], [0], [1], [0, 0, 1, 1], [], []>} : vector<64x16xf32>, vector<16x8xf32>, vector<64x8xf32> -> vector<64x8xf32>
    %35 = arith.addf %28, %34 : vector<64x8xf32>
    %36 = vector.extract_strided_slice %29 {offsets = [0, 1, 0], sizes = [8, 8, 16], strides = [1, 1, 1]} : vector<8x10x16xf32> to vector<8x8x16xf32>
    %37 = vector.shape_cast %36 : vector<8x8x16xf32> to vector<64x16xf32>
    %c1_43 = arith.constant 1 : index
    %c1_44 = arith.constant 1 : index
    %c0_45 = arith.constant 0 : index
    %c0_46 = arith.constant 0 : index
    %38 = vector.load %arg2[%c1_43, %c1_44, %c0_45, %c0_46] : memref<3x3x16x8xf32, #tpu.memory_space<vmem>>, vector<1x1x16x8xf32>
    %39 = vector.shape_cast %38 : vector<1x1x16x8xf32> to vector<16x8xf32>
    %cst_47 = arith.constant dense<0.000000e+00> : vector<64x8xf32>
    %40 = tpu.matmul %37, %39, %cst_47 {dimension_numbers = #tpu.dot_dimension_numbers<[1], [0], [0], [1], [0, 0, 1, 1], [], []>} : vector<64x16xf32>, vector<16x8xf32>, vector<64x8xf32> -> vector<64x8xf32>
    %41 = arith.addf %35, %40 : vector<64x8xf32>
    %42 = vector.extract_strided_slice %29 {offsets = [0, 2, 0], sizes = [8, 8, 16], strides = [1, 1, 1]} : vector<8x10x16xf32> to vector<8x8x16xf32>
    %43 = vector.shape_cast %42 : vector<8x8x16xf32> to vector<64x16xf32>
    %c1_48 = arith.constant 1 : index
    %c2_49 = arith.constant 2 : index
    %c0_50 = arith.constant 0 : index
    %c0_51 = arith.constant 0 : index
    %44 = vector.load %arg2[%c1_48, %c2_49, %c0_50, %c0_51] : memref<3x3x16x8xf32, #tpu.memory_space<vmem>>, vector<1x1x16x8xf32>
    %45 = vector.shape_cast %44 : vector<1x1x16x8xf32> to vector<16x8xf32>
    %cst_52 = arith.constant dense<0.000000e+00> : vector<64x8xf32>
    %46 = tpu.matmul %43, %45, %cst_52 {dimension_numbers = #tpu.dot_dimension_numbers<[1], [0], [0], [1], [0, 0, 1, 1], [], []>} : vector<64x16xf32>, vector<16x8xf32>, vector<64x8xf32> -> vector<64x8xf32>
    %47 = arith.addf %41, %46 : vector<64x8xf32>
    %c2_53 = arith.constant 2 : index
    %c0_54 = arith.constant 0 : index
    %c0_55 = arith.constant 0 : index
    %48 = vector.load %arg4[%c2_53, %c0_54, %c0_55] : memref<10x10x16xf32, #tpu.memory_space<vmem>>, vector<8x10x16xf32>
    %49 = vector.extract_strided_slice %48 {offsets = [0, 0, 0], sizes = [8, 8, 16], strides = [1, 1, 1]} : vector<8x10x16xf32> to vector<8x8x16xf32>
    %50 = vector.shape_cast %49 : vector<8x8x16xf32> to vector<64x16xf32>
    %c2_56 = arith.constant 2 : index
    %c0_57 = arith.constant 0 : index
    %c0_58 = arith.constant 0 : index
    %c0_59 = arith.constant 0 : index
    %51 = vector.load %arg2[%c2_56, %c0_57, %c0_58, %c0_59] : memref<3x3x16x8xf32, #tpu.memory_space<vmem>>, vector<1x1x16x8xf32>
    %52 = vector.shape_cast %51 : vector<1x1x16x8xf32> to vector<16x8xf32>
    %cst_60 = arith.constant dense<0.000000e+00> : vector<64x8xf32>
    %53 = tpu.matmul %50, %52, %cst_60 {dimension_numbers = #tpu.dot_dimension_numbers<[1], [0], [0], [1], [0, 0, 1, 1], [], []>} : vector<64x16xf32>, vector<16x8xf32>, vector<64x8xf32> -> vector<64x8xf32>
    %54 = arith.addf %47, %53 : vector<64x8xf32>
    %55 = vector.extract_strided_slice %48 {offsets = [0, 1, 0], sizes = [8, 8, 16], strides = [1, 1, 1]} : vector<8x10x16xf32> to vector<8x8x16xf32>
    %56 = vector.shape_cast %55 : vector<8x8x16xf32> to vector<64x16xf32>
    %c2_61 = arith.constant 2 : index
    %c1_62 = arith.constant 1 : index
    %c0_63 = arith.constant 0 : index
    %c0_64 = arith.constant 0 : index
    %57 = vector.load %arg2[%c2_61, %c1_62, %c0_63, %c0_64] : memref<3x3x16x8xf32, #tpu.memory_space<vmem>>, vector<1x1x16x8xf32>
    %58 = vector.shape_cast %57 : vector<1x1x16x8xf32> to vector<16x8xf32>
    %cst_65 = arith.constant dense<0.000000e+00> : vector<64x8xf32>
    %59 = tpu.matmul %56, %58, %cst_65 {dimension_numbers = #tpu.dot_dimension_numbers<[1], [0], [0], [1], [0, 0, 1, 1], [], []>} : vector<64x16xf32>, vector<16x8xf32>, vector<64x8xf32> -> vector<64x8xf32>
    %60 = arith.addf %54, %59 : vector<64x8xf32>
    %61 = vector.extract_strided_slice %48 {offsets = [0, 2, 0], sizes = [8, 8, 16], strides = [1, 1, 1]} : vector<8x10x16xf32> to vector<8x8x16xf32>
    %62 = vector.shape_cast %61 : vector<8x8x16xf32> to vector<64x16xf32>
    %c2_66 = arith.constant 2 : index
    %c2_67 = arith.constant 2 : index
    %c0_68 = arith.constant 0 : index
    %c0_69 = arith.constant 0 : index
    %63 = vector.load %arg2[%c2_66, %c2_67, %c0_68, %c0_69] : memref<3x3x16x8xf32, #tpu.memory_space<vmem>>, vector<1x1x16x8xf32>
    %64 = vector.shape_cast %63 : vector<1x1x16x8xf32> to vector<16x8xf32>
    %cst_70 = arith.constant dense<0.000000e+00> : vector<64x8xf32>
    %65 = tpu.matmul %62, %64, %cst_70 {dimension_numbers = #tpu.dot_dimension_numbers<[1], [0], [0], [1], [0, 0, 1, 1], [], []>} : vector<64x16xf32>, vector<16x8xf32>, vector<64x8xf32> -> vector<64x8xf32>
    %66 = arith.addf %60, %65 : vector<64x8xf32>
    %67 = vector.shape_cast %66 : vector<64x8xf32> to vector<8x8x8xf32>
    %c0_71 = arith.constant 0 : index
    %c0_72 = arith.constant 0 : index
    %c0_73 = arith.constant 0 : index
    %c0_74 = arith.constant 0 : index
    %68 = vector.load %arg3[%c0_71, %c0_72, %c0_73, %c0_74] : memref<1x8x8x8xf32, #tpu.memory_space<vmem>>, vector<1x8x8x8xf32>
    %69 = vector.shape_cast %68 : vector<1x8x8x8xf32> to vector<8x8x8xf32>
    %70 = vector.shape_cast %67 : vector<8x8x8xf32> to vector<1x8x8x8xf32>
    tpu.vector_store %arg3[%c0_71, %c0_72, %c0_73, %c0_74], %70 {strides = array<i32>} : memref<1x8x8x8xf32, #tpu.memory_space<vmem>>, vector<1x8x8x8xf32>,
    return
  }
  func.func @transform_0(%arg0: i32) -> (i32, i32, i32, i32) {
    %c0_i32 = arith.constant 0 : i32
    %c0_i32_0 = arith.constant 0 : i32
    %c0_i32_1 = arith.constant 0 : i32
    %c0_i32_2 = arith.constant 0 : i32
    return %arg0, %c0_i32, %c0_i32_0, %c0_i32_1 : i32, i32, i32, i32
  }
  func.func @transform_1(%arg0: i32) -> (i32, i32, i32, i32) {
    %c0_i32 = arith.constant 0 : i32
    %c0_i32_0 = arith.constant 0 : i32
    %c0_i32_1 = arith.constant 0 : i32
    %c0_i32_2 = arith.constant 0 : i32
    %c0_i32_3 = arith.constant 0 : i32
    return %c0_i32, %c0_i32_0, %c0_i32_1, %c0_i32_2 : i32, i32, i32, i32
  }
  func.func @transform_2(%arg0: i32) -> (i32, i32, i32, i32) {
    %c0_i32 = arith.constant 0 : i32
    %c0_i32_0 = arith.constant 0 : i32
    %c0_i32_1 = arith.constant 0 : i32
    %c0_i32_2 = arith.constant 0 : i32
    return %arg0, %c0_i32, %c0_i32_0, %c0_i32_1 : i32, i32, i32, i32
  }
}

</mosaic_0001>

<llo_original>
// kernel: downsample.1
$region0: #{downsample.1}
  #allocation0 [shape = 'u32[]', space=smem, size = 0x4, offset = 0x4, fixed_abs, tag = 'smem constant byte address 0x4 - core index']
  #allocation1 [shape = 'u32[144,128]{1,0:T(1,128)}', space=vmem, size = 0x12000, scoped, tag = 'internal scratch']
  #allocation2 [shape = 'f32[10,10,16]{2,1,0:T(8,128)}', space=vmem, size = 0x14000, scoped, tag = 'scratch operand']
  %s0 = inlined_call_operand.vmem [shape: f32[2,8,8,16], index: 0, kind: input, shape index: {}]
  %s1 = inlined_call_operand.vmem [shape: f32[3,3,16,8], index: 1, kind: input, shape index: {}]
  %s2 = inlined_call_operand.vmem [shape: f32[2,8,8,8], index: 2, kind: output, shape index: {}]
  %s3 = sld [smem:[#allocation0]]
  $region41: #{downsample.1} parent=0
    _
  %s5 = ssub.s32 1, %s3
  %s6 = scalar_select 0, %s5, %s3
  loop: start=0, step=1, limit=4
  $region2: #{downsample.1} parent=0 // loop_pre_header
    _
  $region3: #{downsample.1} parent=0 // loop_header
    %s8 = sphi 0, %s12
    %p9 = scmp.ge.s32.totalorder %s8, 4
    %s18 = sphi 0, %s20
    %s21 = sphi 0, %s18
    %s22 = sphi 0, %s21
    %s38 = sphi 0, %s22
    %s42 = sphi 0, %s42
    %s44 = sphi 0, %s42
    %s45 = sphi 0, %s44
    %s59 = sphi 0, %s45
    %s65 = sphi 0, %s67
    %s68 = sphi 0, %s65
    %s69 = sphi 0, %s68
    %s85 = sphi 0, %s69
  $region4: #{downsample.1} parent=0 // loop_header_branch
    %11 = sbr.rel (%p9) target = $region8
  $region5: #{downsample.1} parent=0 // loop_body
    %s13 = ssub.s32 %s8, 1
    %s14 = ssub.s32 %s8, 2
    %s15 = sadd.s32 %s8, 1
    %s16 = ssub.s32 %s8, %s15
    %p17 = scmp.eq.s32.totalorder %s16, 0
    %s19 = sadd.s32 %s18, 1
    %s20 = scalar_select %p17, %s18, %s19
    %p23 = pneg %p17
    %p24 = scmp.eq.s32.totalorder %s8, 1
    %p25 = por %p23, %p24
    %p26 = scmp.ne.s32.totalorder %s18, %s21
    %p27 = scmp.eq.s32.totalorder %s8, 0
    %p28 = por %p26, %p27
    %p29 = scmp.ne.s32.totalorder %s18, %s21
    %p30 = scmp.eq.s32.totalorder %s13, 1
    %p31 = por %p29, %p30
    %p32 = scmp.ne.s32.totalorder %s21, %s22
    %p33 = scmp.eq.s32.totalorder %s13, 0
    %p34 = por %p32, %p33
    %p35 = scmp.ne.s32.totalorder %s21, %s22
    %p36 = scmp.eq.s32.totalorder %s14, 1
    %p37 = por %p35, %p36
    %p39 = scmp.ne.s32.totalorder %s22, %s38
    %p40 = scmp.eq.s32.totalorder %s14, 0
    %p41 = por %p39, %p40
    %s43 = sadd.s32 %s42, 1
    %p46 = scmp.eq.s32.totalorder %s8, 1
    %p47 = scmp.ne.s32.totalorder %s42, %s44
    %p48 = scmp.eq.s32.totalorder %s8, 0
    %p49 = por %p47, %p48
    %p50 = scmp.ne.s32.totalorder %s42, %s44
    %p51 = scmp.eq.s32.totalorder %s13, 1
    %p52 = por %p50, %p51
    %p53 = scmp.ne.s32.totalorder %s44, %s45
    %p54 = scmp.eq.s32.totalorder %s13, 0
    %p55 = por %p53, %p54
    %p56 = scmp.ne.s32.totalorder %s44, %s45
    %p57 = scmp.eq.s32.totalorder %s14, 1
    %p58 = por %p56, %p57
    %p60 = scmp.ne.s32.totalorder %s45, %s59
    %p61 = scmp.eq.s32.totalorder %s14, 0
    %p62 = por %p60, %p61
    %s63 = ssub.s32 %s8, %s15
    %p64 = scmp.eq.s32.totalorder %s63, 0
    %s66 = sadd.s32 %s65, 1
    %s67 = scalar_select %p64, %s65, %s66
    %p70 = pneg %p64
    %p71 = scmp.eq.s32.totalorder %s8, 1
    %p72 = por %p70, %p71
    %p73 = scmp.ne.s32.totalorder %s65, %s68
    %p74 = scmp.eq.s32.totalorder %s8, 0
    %p75 = por %p73, %p74
    %p76 = scmp.ne.s32.totalorder %s65, %s68
    %p77 = scmp.eq.s32.totalorder %s13, 1
    %p78 = por %p76, %p77
    %p79 = scmp.ne.s32.totalorder %s68, %s69
    %p80 = scmp.eq.s32.totalorder %s13, 0
    %p81 = por %p79, %p80
    %p82 = scmp.ne.s32.totalorder %s68, %s69
    %p83 = scmp.eq.s32.totalorder %s14, 1
    %p84 = por %p82, %p83
    %p86 = scmp.ne.s32.totalorder %s69, %s85
    %p87 = scmp.eq.s32.totalorder %s14, 0
    %p88 = por %p86, %p87
    %p89 = scmp.le.s32.totalorder 1, %s8
    %p90 = scmp.lt.s32.totalorder %s8, 3
    %p91 = pnand %p89, %p90
    %p92 = pneg %p91
    // Predicated region
    $region9: #{downsample.1} parent=5 // pred_check
      _
    $region10: #{downsample.1} parent=5 // pred_check_branch
      %94 = sbr.rel (%p91) target = $region12
    $region11: #{downsample.1} parent=5 // pred_region
      %s95 = ssub.s32 %s8, 1
      // Predicated region
      $region13: #{downsample.1} parent=11 // pred_check
        %p96 = pneg %p55
      $region14: #{downsample.1} parent=11 // pred_check_branch
        %98 = sbr.rel (%p96) target = $region16
      $region15: #{downsample.1} parent=11 // pred_region
        _
      $region16: #{downsample.1} parent=11 // pred_fallthru
        _
    $region12: #{downsample.1} parent=5 // pred_fallthru
      _
    %p99 = scmp.lt.s32.totalorder %s8, 2
    // Predicated region
    $region17: #{downsample.1} parent=5 // pred_check
      %p100 = pneg %p99
    $region18: #{downsample.1} parent=5 // pred_check_branch
      %102 = sbr.rel (%p100) target = $region20
    $region19: #{downsample.1} parent=5 // pred_region
      // Predicated region
      $region21: #{downsample.1} parent=19 // pred_check
        %p103 = pneg %p28
      $region22: #{downsample.1} parent=19 // pred_check_branch
        %105 = sbr.rel (%p103) target = $region24
      $region23: #{downsample.1} parent=19 // pred_region
        %p106 = scmp.lt.s32.totalorder %s8, 1
        %s107 = scalar_select %p106, %s8, 1
        %s108 = smul.addr %s107, 8
        %s109 = smul.addr %s108, 8
        %s110 = scalar_lea.vmem %s0, %s109
      $region24: #{downsample.1} parent=19 // pred_fallthru
        _
    $region20: #{downsample.1} parent=5 // pred_fallthru
      _
    %p111 = scmp.le.s32.totalorder 1, %s8
    %p112 = scmp.lt.s32.totalorder %s8, 3
    %p113 = pnand %p111, %p112
    %p114 = pneg %p113
    // Predicated region
    $region25: #{downsample.1} parent=5 // pred_check
      _
    $region26: #{downsample.1} parent=5 // pred_check_branch
      %116 = sbr.rel (%p113) target = $region28
    $region27: #{downsample.1} parent=5 // pred_region
      %s117 = ssub.s32 %s8, 1
      %p118 = scmp.lt.s32.totalorder %s13, 1
      %s119 = scalar_select %p118, %s13, 1
      %s120 = smul.addr %s119, 8
      %s121 = smul.addr %s120, 8
      %s122 = scalar_lea.vmem %s0, %s121
      %p123 = pneg %p34
      %p124 = pneg %p31
      %p125 = pneg %p55
      %p126 = pneg %p52
      %p127 = pneg %p81
      %p128 = pneg %p78
      %p129 = scmp.lt.s32.totalorder %s13, 1
      %s130 = scalar_select %p129, %s13, 1
      %s131 = smul.addr %s130, 8
      %s132 = smul.addr %s131, 8
      %s133 = scalar_lea.vmem %s2, %s132
      %p134 = scmp.lt.s32.totalorder %s13, 1
      %s135 = scalar_select %p134, %s13, 1
      %s136 = smul.addr %s135, 8
      %s137 = smul.addr %s136, 8
      %s138 = scalar_lea.vmem %s0, %s137
      %p139 = scmp.lt.s32.totalorder %s13, 1
      %s140 = scalar_select %p139, %s13, 1
      %s141 = smul.addr %s140, 8
      %s142 = smul.addr %s141, 8
      %s143 = scalar_lea.vmem %s2, %s142
      %vm144 = vcmask 130048
      %145 = vst.msk [vmem:[#allocation2] sm:$0xff] %vm144, 0.0
      %vm146 = vcmask 123904
      %147 = vst.msk [vmem:[#allocation2 + $0x8] sm:$0x3] %vm146, 0.0
      %s148 = scalar_lea.vmem [#allocation2], 144
      %149 = vst.msk [vmem:[%s148] sm:$0xff] %vm144, 0.0
      %150 = vst.msk [vmem:[%s148 + $0x8] sm:$0x3] %vm146, 0.0
      %vm151 = vcmask 122880
      %152 = vst.msk [vmem:[#allocation2] sm:$0x1] %vm151, 0.0
      %153 = vst.msk [vmem:[#allocation2 + $0x10] sm:$0x1] %vm151, 0.0
      %154 = vst.msk [vmem:[#allocation2 + $0x20] sm:$0x1] %vm151, 0.0
      %155 = vst.msk [vmem:[#allocation2 + $0x30] sm:$0x1] %vm151, 0.0
      %156 = vst.msk [vmem:[#allocation2 + $0x40] sm:$0x1] %vm151, 0.0
      %157 = vst.msk [vmem:[#allocation2 + $0x50] sm:$0x1] %vm151, 0.0
      %158 = vst.msk [vmem:[#allocation2 + $0x60] sm:$0x1] %vm151, 0.0
      %159 = vst.msk [vmem:[#allocation2 + $0x70] sm:$0x1] %vm151, 0.0
      %160 = vst.msk [vmem:[#allocation2 + $0x80] sm:$0x1] %vm151, 0.0
      %161 = vst.msk [vmem:[#allocation2 + $0x90] sm:$0x1] %vm151, 0.0
      %162 = vst.msk [vmem:[#allocation2 + $0x9] sm:$0x1] %vm151, 0.0
      %163 = vst.msk [vmem:[#allocation2 + $0x19] sm:$0x1] %vm151, 0.0
      %164 = vst.msk [vmem:[#allocation2 + $0x29] sm:$0x1] %vm151, 0.0
      %165 = vst.msk [vmem:[#allocation2 + $0x39] sm:$0x1] %vm151, 0.0
      %166 = vst.msk [vmem:[#allocation2 + $0x49] sm:$0x1] %vm151, 0.0
      %167 = vst.msk [vmem:[#allocation2 + $0x59] sm:$0x1] %vm151, 0.0
      %168 = vst.msk [vmem:[#allocation2 + $0x69] sm:$0x1] %vm151, 0.0
      %169 = vst.msk [vmem:[#allocation2 + $0x79] sm:$0x1] %vm151, 0.0
      %170 = vst.msk [vmem:[#allocation2 + $0x89] sm:$0x1] %vm151, 0.0
      %171 = vst.msk [vmem:[#allocation2 + $0x99] sm:$0x1] %vm151, 0.0
      %v172 = vld [vmem:[%s138] sm:$0xff]
      %v173 = vld [vmem:[%s138 + $0x8] sm:$0xff]
      %v174 = vld [vmem:[%s138 + $0x10] sm:$0xff]
      %v175 = vld [vmem:[%s138 + $0x18] sm:$0xff]
      %v176 = vld [vmem:[%s138 + $0x20] sm:$0xff]
      %v177 = vld [vmem:[%s138 + $0x28] sm:$0xff]
      %v178 = vld [vmem:[%s138 + $0x30] sm:$0xff]
      %v179 = vld [vmem:[%s138 + $0x38] sm:$0xff]
      %s180 = scalar_lea.vmem [#allocation2], 16
      %181 = vst.msk [vmem:[%s180 + $0x1] sm:$0xff] %vm144, %v172
      %182 = vst.msk [vmem:[%s180 + $0x11] sm:$0xff] %vm144, %v173
      %183 = vst.msk [vmem:[%s180 + $0x21] sm:$0xff] %vm144, %v174
      %184 = vst.msk [vmem:[%s180 + $0x31] sm:$0xff] %vm144, %v175
      %185 = vst.msk [vmem:[%s180 + $0x41] sm:$0xff] %vm144, %v176
      %186 = vst.msk [vmem:[%s180 + $0x51] sm:$0xff] %vm144, %v177
      %187 = vst.msk [vmem:[%s180 + $0x61] sm:$0xff] %vm144, %v178
      %188 = vst.msk [vmem:[%s180 + $0x71] sm:$0xff] %vm144, %v179
      %v189 = vld [vmem:[#allocation2] sm:$0xff]
      %v190 = vld [vmem:[#allocation2 + $0x8] sm:$0x3]
      %v191 = vld [vmem:[#allocation2 + $0x10] sm:$0xff]
      %v192 = vld [vmem:[#allocation2 + $0x18] sm:$0x3]
      %v193 = vld [vmem:[#allocation2 + $0x20] sm:$0xff]
      %v194 = vld [vmem:[#allocation2 + $0x28] sm:$0x3]
      %v195 = vld [vmem:[#allocation2 + $0x30] sm:$0xff]
      %v196 = vld [vmem:[#allocation2 + $0x38] sm:$0x3]
      %v197 = vld [vmem:[#allocation2 + $0x40] sm:$0xff]
      %v198 = vld [vmem:[#allocation2 + $0x48] sm:$0x3]
      %v199 = vld [vmem:[#allocation2 + $0x50] sm:$0xff]
      %v200 = vld [vmem:[#allocation2 + $0x58] sm:$0x3]
      %v201 = vld [vmem:[#allocation2 + $0x60] sm:$0xff]
      %v202 = vld [vmem:[#allocation2 + $0x68] sm:$0x3]
      %v203 = vld [vmem:[#allocation2 + $0x70] sm:$0xff]
      %v204 = vld [vmem:[#allocation2 + $0x78] sm:$0x3]
      %v205 = vld [vmem:[%s1] sm:$0xff]
      %v206 = vld [vmem:[%s1 + $0x8] sm:$0xff]
      %vm223 = vcmask 1046528
      %v224 = vrot.slane %v189, 1
      %v225 = vrot.slane %v190, 1
      %v226 = vsel %vm223, %v224, %v225
      %v227 = vrot.slane %v191, 1
      %v228 = vrot.slane %v192, 1
      %v229 = vsel %vm223, %v227, %v228
      %v230 = vrot.slane %v193, 1
      %v231 = vrot.slane %v194, 1
      %v232 = vsel %vm223, %v230, %v231
      %v233 = vrot.slane %v195, 1
      %v234 = vrot.slane %v196, 1
      %v235 = vsel %vm223, %v233, %v234
      %v236 = vrot.slane %v197, 1
      %v237 = vrot.slane %v198, 1
      %v238 = vsel %vm223, %v236, %v237
      %v239 = vrot.slane %v199, 1
      %v240 = vrot.slane %v200, 1
      %v241 = vsel %vm223, %v239, %v240
      %v242 = vrot.slane %v201, 1
      %v243 = vrot.slane %v202, 1
      %v244 = vsel %vm223, %v242, %v243
      %v245 = vrot.slane %v203, 1
      %v246 = vrot.slane %v204, 1
      %v247 = vsel %vm223, %v245, %v246
      %s248 = scalar_lea.vmem %s1, 16
      %v249 = vld [vmem:[%s248] sm:$0xff]
      %v250 = vld [vmem:[%s248 + $0x8] sm:$0xff]
      %v251 = vsel %vm144, %v226, 0
      %v253 = vsel %vm144, %v229, 0
      %v255 = vsel %vm144, %v232, 0
      %v257 = vsel %vm144, %v235, 0
      %v259 = vsel %vm144, %v238, 0
      %v261 = vsel %vm144, %v241, 0
      %v263 = vsel %vm144, %v244, 0
      %v265 = vsel %vm144, %v247, 0
      %267 = vmatprep.subr.mxu0 0.0
      %268 = vmatpush1.msra.mxu0 %v249
      %269 = vmatprep.subr.mxu0 0.0
      %270 = vmatpush1.msra.mxu0 %v250
      %271 = vmatprep.subr.mxu0 0.0
      %272 = vmatpush1.msra.mxu0 0.0
      %273 = vmatprep.subr.mxu0 0.0
      %274 = vmatpush1.msra.mxu0 0.0
      %275 = vmatprep.subr.mxu0 0.0
      %276 = vmatpush1.msra.mxu0 0.0
      %277 = vmatprep.subr.mxu0 0.0
      %278 = vmatpush1.msra.mxu0 0.0
      %279 = vmatprep.subr.mxu0 0.0
      %280 = vmatpush1.msra.mxu0 0.0
      %281 = vmatprep.subr.mxu0 0.0
      %282 = vmatpush1.msra.mxu0 0.0
      %283 = vmatprep.subr.mxu0 0.0
      %284 = vmatpush1.msra.mxu0 0.0
      %285 = vmatprep.subr.mxu0 0.0
      %286 = vmatpush1.msra.mxu0 0.0
      %287 = vmatprep.subr.mxu0 0.0
      %288 = vmatpush1.msra.mxu0 0.0
      %289 = vmatprep.subr.mxu0 0.0
      %290 = vmatpush1.msra.mxu0 0.0
      %291 = vmatprep.subr.mxu0 0.0
      %292 = vmatpush1.msra.mxu0 0.0
      %293 = vmatprep.subr.mxu0 0.0
      %294 = vmatpush1.msra.mxu0 0.0
      %295 = vmatprep.subr.mxu0 0.0
      %296 = vmatpush1.msra.mxu0 0.0
      %297 = vmatprep.subr.mxu0 0.0
      %298 = vmatpush1.msra.mxu0 0.0
      %299 = vmatprep.subr.mxu0 0.0
      %300 = vmatpush1.msra.mxu0 0.0
      %301 = vmatprep.subr.mxu0 0.0
      %302 = vmatpush1.msra.mxu0 0.0
      %303 = vmatprep.subr.mxu0 0.0
      %304 = vmatpush1.msra.mxu0 0.0
      %305 = vmatprep.subr.mxu0 0.0
      %306 = vmatpush1.msra.mxu0 0.0
      %307 = vmatprep.subr.mxu0 0.0
      %308 = vmatpush1.msra.mxu0 0.0
      %309 = vmatprep.subr.mxu0 0.0
      %310 = vmatpush1.msra.mxu0 0.0
      %311 = vmatprep.subr.mxu0 0.0
      %312 = vmatpush1.msra.mxu0 0.0
      %313 = vmatprep.subr.mxu0 0.0
      %314 = vmatpush1.msra.mxu0 0.0
      %315 = vmatprep.subr.mxu0 0.0
      %316 = vmatpush1.msra.mxu0 0.0
      %317 = vmatprep.subr.mxu0 0.0
      %318 = vmatpush1.msra.mxu0 0.0
      %319 = vmatprep.subr.mxu0 0.0
      %320 = vmatpush1.msra.mxu0 0.0
      %321 = vmatprep.subr.mxu0 0.0
      %322 = vmatpush1.msra.mxu0 0.0
      %323 = vmatprep.subr.mxu0 0.0
      %324 = vmatpush1.msra.mxu0 0.0
      %325 = vmatprep.subr.mxu0 0.0
      %326 = vmatpush1.msra.mxu0 0.0
      %327 = vmatprep.subr.mxu0 0.0
      %328 = vmatpush1.msra.mxu0 0.0
      %329 = vmatprep.subr.mxu0 0.0
      %330 = vmatpush1.msra.mxu0 0.0
      %331 = vmatprep.mubr.f32.mxu0 0.0
      %332 = vmatmul.mubr.f32.gmra.mrb[0].mxu0 %v251
      %v333 = vpop.f32.mrb[0].mxu0
      %v334 = vadd.f32 0.0, %v333
      %v335 = vpop.f32.mrb[0].mxu0
      %336 = vmatprep.mubr.f32.mxu0 0.0
      %337 = vmatmul.mubr.f32.gmra.mrb[0].mxu0 %v253
      %v338 = vpop.f32.mrb[0].mxu0
      %v339 = vadd.f32 0.0, %v338
      %v340 = vpop.f32.mrb[0].mxu0
      %341 = vmatprep.mubr.f32.mxu0 0.0
      %342 = vmatmul.mubr.f32.gmra.mrb[0].mxu0 %v255
      %v343 = vpop.f32.mrb[0].mxu0
      %v344 = vadd.f32 0.0, %v343
      %v345 = vpop.f32.mrb[0].mxu0
      %346 = vmatprep.mubr.f32.mxu0 0.0
      %347 = vmatmul.mubr.f32.gmra.mrb[0].mxu0 %v257
      %v348 = vpop.f32.mrb[0].mxu0
      %v349 = vadd.f32 0.0, %v348
      %v350 = vpop.f32.mrb[0].mxu0
      %351 = vmatprep.mubr.f32.mxu0 0.0
      %352 = vmatmul.mubr.f32.gmra.mrb[0].mxu0 %v259
      %v353 = vpop.f32.mrb[0].mxu0
      %v354 = vadd.f32 0.0, %v353
      %v355 = vpop.f32.mrb[0].mxu0
      %356 = vmatprep.mubr.f32.mxu0 0.0
      %357 = vmatmul.mubr.f32.gmra.mrb[0].mxu0 %v261
      %v358 = vpop.f32.mrb[0].mxu0
      %v359 = vadd.f32 0.0, %v358
      %v360 = vpop.f32.mrb[0].mxu0
      %361 = vmatprep.mubr.f32.mxu0 0.0
      %362 = vmatmul.mubr.f32.gmra.mrb[0].mxu0 %v263
      %v363 = vpop.f32.mrb[0].mxu0
      %v364 = vadd.f32 0.0, %v363
      %v365 = vpop.f32.mrb[0].mxu0
      %366 = vmatprep.mubr.f32.mxu0 0.0
      %367 = vmatmul.mubr.f32.gmra.mrb[0].mxu0 %v265
      %v368 = vpop.f32.mrb[0].mxu0
      %v369 = vadd.f32 0.0, %v368
      %v370 = vpop.f32.mrb[0].mxu0
      %371 = vdwg.mxu0
      %v372 = vsel %vm144, %v189, 0
      %v374 = vsel %vm144, %v191, 0
      %v376 = vsel %vm144, %v193, 0
      %v378 = vsel %vm144, %v195, 0
      %v380 = vsel %vm144, %v197, 0
      %v382 = vsel %vm144, %v199, 0
      %v384 = vsel %vm144, %v201, 0
      %v386 = vsel %vm144, %v203, 0
      %388 = vmatprep.subr.mxu0 0.0
      %389 = vmatpush1.msra.mxu0 %v205
      %390 = vmatprep.subr.mxu0 0.0
      %391 = vmatpush1.msra.mxu0 %v206
      %392 = vmatprep.subr.mxu0 0.0
      %393 = vmatpush1.msra.mxu0 0.0
      %394 = vmatprep.subr.mxu0 0.0
      %395 = vmatpush1.msra.mxu0 0.0
      %396 = vmatprep.subr.mxu0 0.0
      %397 = vmatpush1.msra.mxu0 0.0
      %398 = vmatprep.subr.mxu0 0.0
      %399 = vmatpush1.msra.mxu0 0.0
      %400 = vmatprep.subr.mxu0 0.0
      %401 = vmatpush1.msra.mxu0 0.0
      %402 = vmatprep.subr.mxu0 0.0
      %403 = vmatpush1.msra.mxu0 0.0
      %404 = vmatprep.subr.mxu0 0.0
      %405 = vmatpush1.msra.mxu0 0.0
      %406 = vmatprep.subr.mxu0 0.0
      %407 = vmatpush1.msra.mxu0 0.0
      %408 = vmatprep.subr.mxu0 0.0
      %409 = vmatpush1.msra.mxu0 0.0
      %410 = vmatprep.subr.mxu0 0.0
      %411 = vmatpush1.msra.mxu0 0.0
      %412 = vmatprep.subr.mxu0 0.0
      %413 = vmatpush1.msra.mxu0 0.0
      %414 = vmatprep.subr.mxu0 0.0
      %415 = vmatpush1.msra.mxu0 0.0
      %416 = vmatprep.subr.mxu0 0.0
      %417 = vmatpush1.msra.mxu0 0.0
      %418 = vmatprep.subr.mxu0 0.0
      %419 = vmatpush1.msra.mxu0 0.0
      %420 = vmatprep.subr.mxu0 0.0
      %421 = vmatpush1.msra.mxu0 0.0
      %422 = vmatprep.subr.mxu0 0.0
      %423 = vmatpush1.msra.mxu0 0.0
      %424 = vmatprep.subr.mxu0 0.0
      %425 = vmatpush1.msra.mxu0 0.0
      %426 = vmatprep.subr.mxu0 0.0
      %427 = vmatpush1.msra.mxu0 0.0
      %428 = vmatprep.subr.mxu0 0.0
      %429 = vmatpush1.msra.mxu0 0.0
      %430 = vmatprep.subr.mxu0 0.0
      %431 = vmatpush1.msra.mxu0 0.0
      %432 = vmatprep.subr.mxu0 0.0
      %433 = vmatpush1.msra.mxu0 0.0
      %434 = vmatprep.subr.mxu0 0.0
      %435 = vmatpush1.msra.mxu0 0.0
      %436 = vmatprep.subr.mxu0 0.0
      %437 = vmatpush1.msra.mxu0 0.0
      %438 = vmatprep.subr.mxu0 0.0
      %439 = vmatpush1.msra.mxu0 0.0
      %440 = vmatprep.subr.mxu0 0.0
      %441 = vmatpush1.msra.mxu0 0.0
      %442 = vmatprep.subr.mxu0 0.0
      %443 = vmatpush1.msra.mxu0 0.0
      %444 = vmatprep.subr.mxu0 0.0
      %445 = vmatpush1.msra.mxu0 0.0
      %446 = vmatprep.subr.mxu0 0.0
      %447 = vmatpush1.msra.mxu0 0.0
      %448 = vmatprep.subr.mxu0 0.0
      %449 = vmatpush1.msra.mxu0 0.0
      %450 = vmatprep.subr.mxu0 0.0
      %451 = vmatpush1.msra.mxu0 0.0
      %452 = vmatprep.mubr.f32.mxu0 0.0
      %453 = vmatmul.mubr.f32.gmra.mrb[0].mxu0 %v372
      %v454 = vpop.f32.mrb[0].mxu0
      %v455 = vadd.f32 %v334, %v454
      %v456 = vpop.f32.mrb[0].mxu0
      %457 = vmatprep.mubr.f32.mxu0 0.0
      %458 = vmatmul.mubr.f32.gmra.mrb[0].mxu0 %v374
      %v459 = vpop.f32.mrb[0].mxu0
      %v460 = vadd.f32 %v339, %v459
      %v461 = vpop.f32.mrb[0].mxu0
      %462 = vmatprep.mubr.f32.mxu0 0.0
      %463 = vmatmul.mubr.f32.gmra.mrb[0].mxu0 %v376
      %v464 = vpop.f32.mrb[0].mxu0
      %v465 = vadd.f32 %v344, %v464
      %v466 = vpop.f32.mrb[0].mxu0
      %467 = vmatprep.mubr.f32.mxu0 0.0
      %468 = vmatmul.mubr.f32.gmra.mrb[0].mxu0 %v378
      %v469 = vpop.f32.mrb[0].mxu0
      %v470 = vadd.f32 %v349, %v469
      %v471 = vpop.f32.mrb[0].mxu0
      %472 = vmatprep.mubr.f32.mxu0 0.0
      %473 = vmatmul.mubr.f32.gmra.mrb[0].mxu0 %v380
      %v474 = vpop.f32.mrb[0].mxu0
      %v475 = vadd.f32 %v354, %v474
      %v476 = vpop.f32.mrb[0].mxu0
      %477 = vmatprep.mubr.f32.mxu0 0.0
      %478 = vmatmul.mubr.f32.gmra.mrb[0].mxu0 %v382
      %v479 = vpop.f32.mrb[0].mxu0
      %v480 = vadd.f32 %v359, %v479
      %v481 = vpop.f32.mrb[0].mxu0
      %482 = vmatprep.mubr.f32.mxu0 0.0
      %483 = vmatmul.mubr.f32.gmra.mrb[0].mxu0 %v384
      %v484 = vpop.f32.mrb[0].mxu0
      %v485 = vadd.f32 %v364, %v484
      %v486 = vpop.f32.mrb[0].mxu0
      %487 = vmatprep.mubr.f32.mxu0 0.0
      %488 = vmatmul.mubr.f32.gmra.mrb[0].mxu0 %v386
      %v489 = vpop.f32.mrb[0].mxu0
      %v490 = vadd.f32 %v369, %v489
      %v491 = vpop.f32.mrb[0].mxu0
      %492 = vdwg.mxu0
      %vm493 = vcmask 1045504
      %v494 = vrot.slane %v189, 2
      %v495 = vrot.slane %v190, 2
      %v496 = vsel %vm493, %v494, %v495
      %v497 = vrot.slane %v191, 2
      %v498 = vrot.slane %v192, 2
      %v499 = vsel %vm493, %v497, %v498
      %v500 = vrot.slane %v193, 2
      %v501 = vrot.slane %v194, 2
      %v502 = vsel %vm493, %v500, %v501
      %v503 = vrot.slane %v195, 2
      %v504 = vrot.slane %v196, 2
      %v505 = vsel %vm493, %v503, %v504
      %v506 = vrot.slane %v197, 2
      %v507 = vrot.slane %v198, 2
      %v508 = vsel %vm493, %v506, %v507
      %v509 = vrot.slane %v199, 2
      %v510 = vrot.slane %v200, 2
      %v511 = vsel %vm493, %v509, %v510
      %v512 = vrot.slane %v201, 2
      %v513 = vrot.slane %v202, 2
      %v514 = vsel %vm493, %v512, %v513
      %v515 = vrot.slane %v203, 2
      %v516 = vrot.slane %v204, 2
      %v517 = vsel %vm493, %v515, %v516
      %s518 = scalar_lea.vmem %s1, 32
      %v519 = vld [vmem:[%s518] sm:$0xff]
      %v520 = vld [vmem:[%s518 + $0x8] sm:$0xff]
      %v521 = vsel %vm144, %v496, 0
      %v523 = vsel %vm144, %v499, 0
      %v525 = vsel %vm144, %v502, 0
      %v527 = vsel %vm144, %v505, 0
      %v529 = vsel %vm144, %v508, 0
      %v531 = vsel %vm144, %v511, 0
      %v533 = vsel %vm144, %v514, 0
      %v535 = vsel %vm144, %v517, 0
      %537 = vmatprep.subr.mxu0 0.0
      %538 = vmatpush1.msra.mxu0 %v519
      %539 = vmatprep.subr.mxu0 0.0
      %540 = vmatpush1.msra.mxu0 %v520
      %541 = vmatprep.subr.mxu0 0.0
      %542 = vmatpush1.msra.mxu0 0.0
      %543 = vmatprep.subr.mxu0 0.0
      %544 = vmatpush1.msra.mxu0 0.0
      %545 = vmatprep.subr.mxu0 0.0
      %546 = vmatpush1.msra.mxu0 0.0
      %547 = vmatprep.subr.mxu0 0.0
      %548 = vmatpush1.msra.mxu0 0.0
      %549 = vmatprep.subr.mxu0 0.0
      %550 = vmatpush1.msra.mxu0 0.0
      %551 = vmatprep.subr.mxu0 0.0
      %552 = vmatpush1.msra.mxu0 0.0
      %553 = vmatprep.subr.mxu0 0.0
      %554 = vmatpush1.msra.mxu0 0.0
      %555 = vmatprep.subr.mxu0 0.0
      %556 = vmatpush1.msra.mxu0 0.0
      %557 = vmatprep.subr.mxu0 0.0
      %558 = vmatpush1.msra.mxu0 0.0
      %559 = vmatprep.subr.mxu0 0.0
      %560 = vmatpush1.msra.mxu0 0.0
      %561 = vmatprep.subr.mxu0 0.0
      %562 = vmatpush1.msra.mxu0 0.0
      %563 = vmatprep.subr.mxu0 0.0
      %564 = vmatpush1.msra.mxu0 0.0
      %565 = vmatprep.subr.mxu0 0.0
      %566 = vmatpush1.msra.mxu0 0.0
      %567 = vmatprep.subr.mxu0 0.0
      %568 = vmatpush1.msra.mxu0 0.0
      %569 = vmatprep.subr.mxu0 0.0
      %570 = vmatpush1.msra.mxu0 0.0
      %571 = vmatprep.subr.mxu0 0.0
      %572 = vmatpush1.msra.mxu0 0.0
      %573 = vmatprep.subr.mxu0 0.0
      %574 = vmatpush1.msra.mxu0 0.0
      %575 = vmatprep.subr.mxu0 0.0
      %576 = vmatpush1.msra.mxu0 0.0
      %577 = vmatprep.subr.mxu0 0.0
      %578 = vmatpush1.msra.mxu0 0.0
      %579 = vmatprep.subr.mxu0 0.0
      %580 = vmatpush1.msra.mxu0 0.0
      %581 = vmatprep.subr.mxu0 0.0
      %582 = vmatpush1.msra.mxu0 0.0
      %583 = vmatprep.subr.mxu0 0.0
      %584 = vmatpush1.msra.mxu0 0.0
      %585 = vmatprep.subr.mxu0 0.0
      %586 = vmatpush1.msra.mxu0 0.0
      %587 = vmatprep.subr.mxu0 0.0
      %588 = vmatpush1.msra.mxu0 0.0
      %589 = vmatprep.subr.mxu0 0.0
      %590 = vmatpush1.msra.mxu0 0.0
      %591 = vmatprep.subr.mxu0 0.0
      %592 = vmatpush1.msra.mxu0 0.0
      %593 = vmatprep.subr.mxu0 0.0
      %594 = vmatpush1.msra.mxu0 0.0
      %595 = vmatprep.subr.mxu0 0.0
      %596 = vmatpush1.msra.mxu0 0.0
      %597 = vmatprep.subr.mxu0 0.0
      %598 = vmatpush1.msra.mxu0 0.0
      %599 = vmatprep.subr.mxu0 0.0
      %600 = vmatpush1.msra.mxu0 0.0
      %601 = vmatprep.mubr.f32.mxu0 0.0
      %602 = vmatmul.mubr.f32.gmra.mrb[0].mxu0 %v521
      %v603 = vpop.f32.mrb[0].mxu0
      %v604 = vadd.f32 0.0, %v603
      %v605 = vpop.f32.mrb[0].mxu0
      %606 = vmatprep.mubr.f32.mxu0 0.0
      %607 = vmatmul.mubr.f32.gmra.mrb[0].mxu0 %v523
      %v608 = vpop.f32.mrb[0].mxu0
      %v609 = vadd.f32 0.0, %v608
      %v610 = vpop.f32.mrb[0].mxu0
      %611 = vmatprep.mubr.f32.mxu0 0.0
      %612 = vmatmul.mubr.f32.gmra.mrb[0].mxu0 %v525
      %v613 = vpop.f32.mrb[0].mxu0
      %v614 = vadd.f32 0.0, %v613
      %v615 = vpop.f32.mrb[0].mxu0
      %616 = vmatprep.mubr.f32.mxu0 0.0
      %617 = vmatmul.mubr.f32.gmra.mrb[0].mxu0 %v527
      %v618 = vpop.f32.mrb[0].mxu0
      %v619 = vadd.f32 0.0, %v618
      %v620 = vpop.f32.mrb[0].mxu0
      %621 = vmatprep.mubr.f32.mxu0 0.0
      %622 = vmatmul.mubr.f32.gmra.mrb[0].mxu0 %v529
      %v623 = vpop.f32.mrb[0].mxu0
      %v624 = vadd.f32 0.0, %v623
      %v625 = vpop.f32.mrb[0].mxu0
      %626 = vmatprep.mubr.f32.mxu0 0.0
      %627 = vmatmul.mubr.f32.gmra.mrb[0].mxu0 %v531
      %v628 = vpop.f32.mrb[0].mxu0
      %v629 = vadd.f32 0.0, %v628
      %v630 = vpop.f32.mrb[0].mxu0
      %631 = vmatprep.mubr.f32.mxu0 0.0
      %632 = vmatmul.mubr.f32.gmra.mrb[0].mxu0 %v533
      %v633 = vpop.f32.mrb[0].mxu0
      %v634 = vadd.f32 0.0, %v633
      %v635 = vpop.f32.mrb[0].mxu0
      %636 = vmatprep.mubr.f32.mxu0 0.0
      %637 = vmatmul.mubr.f32.gmra.mrb[0].mxu0 %v535
      %v638 = vpop.f32.mrb[0].mxu0
      %v639 = vadd.f32 0.0, %v638
      %v640 = vpop.f32.mrb[0].mxu0
      %641 = vdwg.mxu0
      %v642 = vadd.f32 %v455, %v604
      %v643 = vadd.f32 %v460, %v609
      %v644 = vadd.f32 %v465, %v614
      %v645 = vadd.f32 %v470, %v619
      %v646 = vadd.f32 %v475, %v624
      %v647 = vadd.f32 %v480, %v629
      %v648 = vadd.f32 %v485, %v634
      %v649 = vadd.f32 %v490, %v639
      %v650 = vld [vmem:[%s180] sm:$0xff]
      %v651 = vld [vmem:[%s180 + $0x8] sm:$0x3]
      %v652 = vld [vmem:[%s180 + $0x10] sm:$0xff]
      %v653 = vld [vmem:[%s180 + $0x18] sm:$0x3]
      %v654 = vld [vmem:[%s180 + $0x20] sm:$0xff]
      %v655 = vld [vmem:[%s180 + $0x28] sm:$0x3]
      %v656 = vld [vmem:[%s180 + $0x30] sm:$0xff]
      %v657 = vld [vmem:[%s180 + $0x38] sm:$0x3]
      %v658 = vld [vmem:[%s180 + $0x40] sm:$0xff]
      %v659 = vld [vmem:[%s180 + $0x48] sm:$0x3]
      %v660 = vld [vmem:[%s180 + $0x50] sm:$0xff]
      %v661 = vld [vmem:[%s180 + $0x58] sm:$0x3]
      %v662 = vld [vmem:[%s180 + $0x60] sm:$0xff]
      %v663 = vld [vmem:[%s180 + $0x68] sm:$0x3]
      %v664 = vld [vmem:[%s180 + $0x70] sm:$0xff]
      %v665 = vld [vmem:[%s180 + $0x78] sm:$0x3]
      %s666 = scalar_lea.vmem %s1, 48
      %v667 = vld [vmem:[%s666] sm:$0xff]
      %v668 = vld [vmem:[%s666 + $0x8] sm:$0xff]
      %v670 = vsel %vm144, %v650, 0
      %v673 = vsel %vm144, %v652, 0
      %v676 = vsel %vm144, %v654, 0
      %v679 = vsel %vm144, %v656, 0
      %v682 = vsel %vm144, %v658, 0
      %v685 = vsel %vm144, %v660, 0
      %v688 = vsel %vm144, %v662, 0
      %v691 = vsel %vm144, %v664, 0
      %693 = vmatprep.subr.mxu0 0.0
      %694 = vmatpush1.msra.mxu0 %v667
      %695 = vmatprep.subr.mxu0 0.0
      %696 = vmatpush1.msra.mxu0 %v668
      %697 = vmatprep.subr.mxu0 0.0
      %698 = vmatpush1.msra.mxu0 0.0
      %699 = vmatprep.subr.mxu0 0.0
      %700 = vmatpush1.msra.mxu0 0.0
      %701 = vmatprep.subr.mxu0 0.0
      %702 = vmatpush1.msra.mxu0 0.0
      %703 = vmatprep.subr.mxu0 0.0
      %704 = vmatpush1.msra.mxu0 0.0
      %705 = vmatprep.subr.mxu0 0.0
      %706 = vmatpush1.msra.mxu0 0.0
      %707 = vmatprep.subr.mxu0 0.0
      %708 = vmatpush1.msra.mxu0 0.0
      %709 = vmatprep.subr.mxu0 0.0
      %710 = vmatpush1.msra.mxu0 0.0
      %711 = vmatprep.subr.mxu0 0.0
      %712 = vmatpush1.msra.mxu0 0.0
      %713 = vmatprep.subr.mxu0 0.0
      %714 = vmatpush1.msra.mxu0 0.0
      %715 = vmatprep.subr.mxu0 0.0
      %716 = vmatpush1.msra.mxu0 0.0
      %717 = vmatprep.subr.mxu0 0.0
      %718 = vmatpush1.msra.mxu0 0.0
      %719 = vmatprep.subr.mxu0 0.0
      %720 = vmatpush1.msra.mxu0 0.0
      %721 = vmatprep.subr.mxu0 0.0
      %722 = vmatpush1.msra.mxu0 0.0
      %723 = vmatprep.subr.mxu0 0.0
      %724 = vmatpush1.msra.mxu0 0.0
      %725 = vmatprep.subr.mxu0 0.0
      %726 = vmatpush1.msra.mxu0 0.0
      %727 = vmatprep.subr.mxu0 0.0
      %728 = vmatpush1.msra.mxu0 0.0
      %729 = vmatprep.subr.mxu0 0.0
      %730 = vmatpush1.msra.mxu0 0.0
      %731 = vmatprep.subr.mxu0 0.0
      %732 = vmatpush1.msra.mxu0 0.0
      %733 = vmatprep.subr.mxu0 0.0
      %734 = vmatpush1.msra.mxu0 0.0
      %735 = vmatprep.subr.mxu0 0.0
      %736 = vmatpush1.msra.mxu0 0.0
      %737 = vmatprep.subr.mxu0 0.0
      %738 = vmatpush1.msra.mxu0 0.0
      %739 = vmatprep.subr.mxu0 0.0
      %740 = vmatpush1.msra.mxu0 0.0
      %741 = vmatprep.subr.mxu0 0.0
      %742 = vmatpush1.msra.mxu0 0.0
      %743 = vmatprep.subr.mxu0 0.0
      %744 = vmatpush1.msra.mxu0 0.0
      %745 = vmatprep.subr.mxu0 0.0
      %746 = vmatpush1.msra.mxu0 0.0
      %747 = vmatprep.subr.mxu0 0.0
      %748 = vmatpush1.msra.mxu0 0.0
      %749 = vmatprep.subr.mxu0 0.0
      %750 = vmatpush1.msra.mxu0 0.0
      %751 = vmatprep.subr.mxu0 0.0
      %752 = vmatpush1.msra.mxu0 0.0
      %753 = vmatprep.subr.mxu0 0.0
      %754 = vmatpush1.msra.mxu0 0.0
      %755 = vmatprep.subr.mxu0 0.0
      %756 = vmatpush1.msra.mxu0 0.0
      %757 = vmatprep.mubr.f32.mxu0 0.0
      %758 = vmatmul.mubr.f32.gmra.mrb[0].mxu0 %v670
      %v759 = vpop.f32.mrb[0].mxu0
      %v760 = vadd.f32 0.0, %v759
      %v761 = vpop.f32.mrb[0].mxu0
      %762 = vmatprep.mubr.f32.mxu0 0.0
      %763 = vmatmul.mubr.f32.gmra.mrb[0].mxu0 %v673
      %v764 = vpop.f32.mrb[0].mxu0
      %v765 = vadd.f32 0.0, %v764
      %v766 = vpop.f32.mrb[0].mxu0
      %767 = vmatprep.mubr.f32.mxu0 0.0
      %768 = vmatmul.mubr.f32.gmra.mrb[0].mxu0 %v676
      %v769 = vpop.f32.mrb[0].mxu0
      %v770 = vadd.f32 0.0, %v769
      %v771 = vpop.f32.mrb[0].mxu0
      %772 = vmatprep.mubr.f32.mxu0 0.0
      %773 = vmatmul.mubr.f32.gmra.mrb[0].mxu0 %v679
      %v774 = vpop.f32.mrb[0].mxu0
      %v775 = vadd.f32 0.0, %v774
      %v776 = vpop.f32.mrb[0].mxu0
      %777 = vmatprep.mubr.f32.mxu0 0.0
      %778 = vmatmul.mubr.f32.gmra.mrb[0].mxu0 %v682
      %v779 = vpop.f32.mrb[0].mxu0
      %v780 = vadd.f32 0.0, %v779
      %v781 = vpop.f32.mrb[0].mxu0
      %782 = vmatprep.mubr.f32.mxu0 0.0
      %783 = vmatmul.mubr.f32.gmra.mrb[0].mxu0 %v685
      %v784 = vpop.f32.mrb[0].mxu0
      %v785 = vadd.f32 0.0, %v784
      %v786 = vpop.f32.mrb[0].mxu0
      %787 = vmatprep.mubr.f32.mxu0 0.0
      %788 = vmatmul.mubr.f32.gmra.mrb[0].mxu0 %v688
      %v789 = vpop.f32.mrb[0].mxu0
      %v790 = vadd.f32 0.0, %v789
      %v791 = vpop.f32.mrb[0].mxu0
      %792 = vmatprep.mubr.f32.mxu0 0.0
      %793 = vmatmul.mubr.f32.gmra.mrb[0].mxu0 %v691
      %v794 = vpop.f32.mrb[0].mxu0
      %v795 = vadd.f32 0.0, %v794
      %v796 = vpop.f32.mrb[0].mxu0
      %797 = vdwg.mxu0
      %v798 = vadd.f32 %v642, %v760
      %v799 = vadd.f32 %v643, %v765
      %v800 = vadd.f32 %v644, %v770
      %v801 = vadd.f32 %v645, %v775
      %v802 = vadd.f32 %v646, %v780
      %v803 = vadd.f32 %v647, %v785
      %v804 = vadd.f32 %v648, %v790
      %v805 = vadd.f32 %v649, %v795
      %v814 = vrot.slane %v650, 1
      %v815 = vrot.slane %v651, 1
      %v816 = vsel %vm223, %v814, %v815
      %v817 = vrot.slane %v652, 1
      %v818 = vrot.slane %v653, 1
      %v819 = vsel %vm223, %v817, %v818
      %v820 = vrot.slane %v654, 1
      %v821 = vrot.slane %v655, 1
      %v822 = vsel %vm223, %v820, %v821
      %v823 = vrot.slane %v656, 1
      %v824 = vrot.slane %v657, 1
      %v825 = vsel %vm223, %v823, %v824
      %v826 = vrot.slane %v658, 1
      %v827 = vrot.slane %v659, 1
      %v828 = vsel %vm223, %v826, %v827
      %v829 = vrot.slane %v660, 1
      %v830 = vrot.slane %v661, 1
      %v831 = vsel %vm223, %v829, %v830
      %v832 = vrot.slane %v662, 1
      %v833 = vrot.slane %v663, 1
      %v834 = vsel %vm223, %v832, %v833
      %v835 = vrot.slane %v664, 1
      %v836 = vrot.slane %v665, 1
      %v837 = vsel %vm223, %v835, %v836
      %s838 = scalar_lea.vmem %s1, 64
      %v839 = vld [vmem:[%s838] sm:$0xff]
      %v840 = vld [vmem:[%s838 + $0x8] sm:$0xff]
      %v841 = vsel %vm144, %v816, 0
      %v843 = vsel %vm144, %v819, 0
      %v845 = vsel %vm144, %v822, 0
      %v847 = vsel %vm144, %v825, 0
      %v849 = vsel %vm144, %v828, 0
      %v851 = vsel %vm144, %v831, 0
      %v853 = vsel %vm144, %v834, 0
      %v855 = vsel %vm144, %v837, 0
      %857 = vmatprep.subr.mxu0 0.0
      %858 = vmatpush1.msra.mxu0 %v839
      %859 = vmatprep.subr.mxu0 0.0
      %860 = vmatpush1.msra.mxu0 %v840
      %861 = vmatprep.subr.mxu0 0.0
      %862 = vmatpush1.msra.mxu0 0.0
      %863 = vmatprep.subr.mxu0 0.0
      %864 = vmatpush1.msra.mxu0 0.0
      %865 = vmatprep.subr.mxu0 0.0
      %866 = vmatpush1.msra.mxu0 0.0
      %867 = vmatprep.subr.mxu0 0.0
      %868 = vmatpush1.msra.mxu0 0.0
      %869 = vmatprep.subr.mxu0 0.0
      %870 = vmatpush1.msra.mxu0 0.0
      %871 = vmatprep.subr.mxu0 0.0
      %872 = vmatpush1.msra.mxu0 0.0
      %873 = vmatprep.subr.mxu0 0.0
      %874 = vmatpush1.msra.mxu0 0.0
      %875 = vmatprep.subr.mxu0 0.0
      %876 = vmatpush1.msra.mxu0 0.0
      %877 = vmatprep.subr.mxu0 0.0
      %878 = vmatpush1.msra.mxu0 0.0
      %879 = vmatprep.subr.mxu0 0.0
      %880 = vmatpush1.msra.mxu0 0.0
      %881 = vmatprep.subr.mxu0 0.0
      %882 = vmatpush1.msra.mxu0 0.0
      %883 = vmatprep.subr.mxu0 0.0
      %884 = vmatpush1.msra.mxu0 0.0
      %885 = vmatprep.subr.mxu0 0.0
      %886 = vmatpush1.msra.mxu0 0.0
      %887 = vmatprep.subr.mxu0 0.0
      %888 = vmatpush1.msra.mxu0 0.0
      %889 = vmatprep.subr.mxu0 0.0
      %890 = vmatpush1.msra.mxu0 0.0
      %891 = vmatprep.subr.mxu0 0.0
      %892 = vmatpush1.msra.mxu0 0.0
      %893 = vmatprep.subr.mxu0 0.0
      %894 = vmatpush1.msra.mxu0 0.0
      %895 = vmatprep.subr.mxu0 0.0
      %896 = vmatpush1.msra.mxu0 0.0
      %897 = vmatprep.subr.mxu0 0.0
      %898 = vmatpush1.msra.mxu0 0.0
      %899 = vmatprep.subr.mxu0 0.0
      %900 = vmatpush1.msra.mxu0 0.0
      %901 = vmatprep.subr.mxu0 0.0
      %902 = vmatpush1.msra.mxu0 0.0
      %903 = vmatprep.subr.mxu0 0.0
      %904 = vmatpush1.msra.mxu0 0.0
      %905 = vmatprep.subr.mxu0 0.0
      %906 = vmatpush1.msra.mxu0 0.0
      %907 = vmatprep.subr.mxu0 0.0
      %908 = vmatpush1.msra.mxu0 0.0
      %909 = vmatprep.subr.mxu0 0.0
      %910 = vmatpush1.msra.mxu0 0.0
      %911 = vmatprep.subr.mxu0 0.0
      %912 = vmatpush1.msra.mxu0 0.0
      %913 = vmatprep.subr.mxu0 0.0
      %914 = vmatpush1.msra.mxu0 0.0
      %915 = vmatprep.subr.mxu0 0.0
      %916 = vmatpush1.msra.mxu0 0.0
      %917 = vmatprep.subr.mxu0 0.0
      %918 = vmatpush1.msra.mxu0 0.0
      %919 = vmatprep.subr.mxu0 0.0
      %920 = vmatpush1.msra.mxu0 0.0
      %921 = vmatprep.mubr.f32.mxu0 0.0
      %922 = vmatmul.mubr.f32.gmra.mrb[0].mxu0 %v841
      %v923 = vpop.f32.mrb[0].mxu0
      %v924 = vadd.f32 0.0, %v923
      %v925 = vpop.f32.mrb[0].mxu0
      %926 = vmatprep.mubr.f32.mxu0 0.0
      %927 = vmatmul.mubr.f32.gmra.mrb[0].mxu0 %v843
      %v928 = vpop.f32.mrb[0].mxu0
      %v929 = vadd.f32 0.0, %v928
      %v930 = vpop.f32.mrb[0].mxu0
      %931 = vmatprep.mubr.f32.mxu0 0.0
      %932 = vmatmul.mubr.f32.gmra.mrb[0].mxu0 %v845
      %v933 = vpop.f32.mrb[0].mxu0
      %v934 = vadd.f32 0.0, %v933
      %v935 = vpop.f32.mrb[0].mxu0
      %936 = vmatprep.mubr.f32.mxu0 0.0
      %937 = vmatmul.mubr.f32.gmra.mrb[0].mxu0 %v847
      %v938 = vpop.f32.mrb[0].mxu0
      %v939 = vadd.f32 0.0, %v938
      %v940 = vpop.f32.mrb[0].mxu0
      %941 = vmatprep.mubr.f32.mxu0 0.0
      %942 = vmatmul.mubr.f32.gmra.mrb[0].mxu0 %v849
      %v943 = vpop.f32.mrb[0].mxu0
      %v944 = vadd.f32 0.0, %v943
      %v945 = vpop.f32.mrb[0].mxu0
      %946 = vmatprep.mubr.f32.mxu0 0.0
      %947 = vmatmul.mubr.f32.gmra.mrb[0].mxu0 %v851
      %v948 = vpop.f32.mrb[0].mxu0
      %v949 = vadd.f32 0.0, %v948
      %v950 = vpop.f32.mrb[0].mxu0
      %951 = vmatprep.mubr.f32.mxu0 0.0
      %952 = vmatmul.mubr.f32.gmra.mrb[0].mxu0 %v853
      %v953 = vpop.f32.mrb[0].mxu0
      %v954 = vadd.f32 0.0, %v953
      %v955 = vpop.f32.mrb[0].mxu0
      %956 = vmatprep.mubr.f32.mxu0 0.0
      %957 = vmatmul.mubr.f32.gmra.mrb[0].mxu0 %v855
      %v958 = vpop.f32.mrb[0].mxu0
      %v959 = vadd.f32 0.0, %v958
      %v960 = vpop.f32.mrb[0].mxu0
      %961 = vdwg.mxu0
      %v962 = vadd.f32 %v798, %v924
      %v963 = vadd.f32 %v799, %v929
      %v964 = vadd.f32 %v800, %v934
      %v965 = vadd.f32 %v801, %v939
      %v966 = vadd.f32 %v802, %v944
      %v967 = vadd.f32 %v803, %v949
      %v968 = vadd.f32 %v804, %v954
      %v969 = vadd.f32 %v805, %v959
      %v970 = vrot.slane %v650, 2
      %v971 = vrot.slane %v651, 2
      %v972 = vsel %vm493, %v970, %v971
      %v973 = vrot.slane %v652, 2
      %v974 = vrot.slane %v653, 2
      %v975 = vsel %vm493, %v973, %v974
      %v976 = vrot.slane %v654, 2
      %v977 = vrot.slane %v655, 2
      %v978 = vsel %vm493, %v976, %v977
      %v979 = vrot.slane %v656, 2
      %v980 = vrot.slane %v657, 2
      %v981 = vsel %vm493, %v979, %v980
      %v982 = vrot.slane %v658, 2
      %v983 = vrot.slane %v659, 2
      %v984 = vsel %vm493, %v982, %v983
      %v985 = vrot.slane %v660, 2
      %v986 = vrot.slane %v661, 2
      %v987 = vsel %vm493, %v985, %v986
      %v988 = vrot.slane %v662, 2
      %v989 = vrot.slane %v663, 2
      %v990 = vsel %vm493, %v988, %v989
      %v991 = vrot.slane %v664, 2
      %v992 = vrot.slane %v665, 2
      %v993 = vsel %vm493, %v991, %v992
      %s994 = scalar_lea.vmem %s1, 80
      %v995 = vld [vmem:[%s994] sm:$0xff]
      %v996 = vld [vmem:[%s994 + $0x8] sm:$0xff]
      %v997 = vsel %vm144, %v972, 0
      %v999 = vsel %vm144, %v975, 0
      %v1001 = vsel %vm144, %v978, 0
      %v1003 = vsel %vm144, %v981, 0
      %v1005 = vsel %vm144, %v984, 0
      %v1007 = vsel %vm144, %v987, 0
      %v1009 = vsel %vm144, %v990, 0
      %v1011 = vsel %vm144, %v993, 0
      %1013 = vmatprep.subr.mxu0 0.0
      %1014 = vmatpush1.msra.mxu0 %v995
      %1015 = vmatprep.subr.mxu0 0.0
      %1016 = vmatpush1.msra.mxu0 %v996
      %1017 = vmatprep.subr.mxu0 0.0
      %1018 = vmatpush1.msra.mxu0 0.0
      %1019 = vmatprep.subr.mxu0 0.0
      %1020 = vmatpush1.msra.mxu0 0.0
      %1021 = vmatprep.subr.mxu0 0.0
      %1022 = vmatpush1.msra.mxu0 0.0
      %1023 = vmatprep.subr.mxu0 0.0
      %1024 = vmatpush1.msra.mxu0 0.0
      %1025 = vmatprep.subr.mxu0 0.0
      %1026 = vmatpush1.msra.mxu0 0.0
      %1027 = vmatprep.subr.mxu0 0.0
      %1028 = vmatpush1.msra.mxu0 0.0
      %1029 = vmatprep.subr.mxu0 0.0
      %1030 = vmatpush1.msra.mxu0 0.0
      %1031 = vmatprep.subr.mxu0 0.0
      %1032 = vmatpush1.msra.mxu0 0.0
      %1033 = vmatprep.subr.mxu0 0.0
      %1034 = vmatpush1.msra.mxu0 0.0
      %1035 = vmatprep.subr.mxu0 0.0
      %1036 = vmatpush1.msra.mxu0 0.0
      %1037 = vmatprep.subr.mxu0 0.0
      %1038 = vmatpush1.msra.mxu0 0.0
      %1039 = vmatprep.subr.mxu0 0.0
      %1040 = vmatpush1.msra.mxu0 0.0
      %1041 = vmatprep.subr.mxu0 0.0
      %1042 = vmatpush1.msra.mxu0 0.0
      %1043 = vmatprep.subr.mxu0 0.0
      %1044 = vmatpush1.msra.mxu0 0.0
      %1045 = vmatprep.subr.mxu0 0.0
      %1046 = vmatpush1.msra.mxu0 0.0
      %1047 = vmatprep.subr.mxu0 0.0
      %1048 = vmatpush1.msra.mxu0 0.0
      %1049 = vmatprep.subr.mxu0 0.0
      %1050 = vmatpush1.msra.mxu0 0.0
      %1051 = vmatprep.subr.mxu0 0.0
      %1052 = vmatpush1.msra.mxu0 0.0
      %1053 = vmatprep.subr.mxu0 0.0
      %1054 = vmatpush1.msra.mxu0 0.0
      %1055 = vmatprep.subr.mxu0 0.0
      %1056 = vmatpush1.msra.mxu0 0.0
      %1057 = vmatprep.subr.mxu0 0.0
      %1058 = vmatpush1.msra.mxu0 0.0
      %1059 = vmatprep.subr.mxu0 0.0
      %1060 = vmatpush1.msra.mxu0 0.0
      %1061 = vmatprep.subr.mxu0 0.0
      %1062 = vmatpush1.msra.mxu0 0.0
      %1063 = vmatprep.subr.mxu0 0.0
      %1064 = vmatpush1.msra.mxu0 0.0
      %1065 = vmatprep.subr.mxu0 0.0
      %1066 = vmatpush1.msra.mxu0 0.0
      %1067 = vmatprep.subr.mxu0 0.0
      %1068 = vmatpush1.msra.mxu0 0.0
      %1069 = vmatprep.subr.mxu0 0.0
      %1070 = vmatpush1.msra.mxu0 0.0
      %1071 = vmatprep.subr.mxu0 0.0
      %1072 = vmatpush1.msra.mxu0 0.0
      %1073 = vmatprep.subr.mxu0 0.0
      %1074 = vmatpush1.msra.mxu0 0.0
      %1075 = vmatprep.subr.mxu0 0.0
      %1076 = vmatpush1.msra.mxu0 0.0
      %1077 = vmatprep.mubr.f32.mxu0 0.0
      %1078 = vmatmul.mubr.f32.gmra.mrb[0].mxu0 %v997
      %v1079 = vpop.f32.mrb[0].mxu0
      %v1080 = vadd.f32 0.0, %v1079
      %v1081 = vpop.f32.mrb[0].mxu0
      %1082 = vmatprep.mubr.f32.mxu0 0.0
      %1083 = vmatmul.mubr.f32.gmra.mrb[0].mxu0 %v999
      %v1084 = vpop.f32.mrb[0].mxu0
      %v1085 = vadd.f32 0.0, %v1084
      %v1086 = vpop.f32.mrb[0].mxu0
      %1087 = vmatprep.mubr.f32.mxu0 0.0
      %1088 = vmatmul.mubr.f32.gmra.mrb[0].mxu0 %v1001
      %v1089 = vpop.f32.mrb[0].mxu0
      %v1090 = vadd.f32 0.0, %v1089
      %v1091 = vpop.f32.mrb[0].mxu0
      %1092 = vmatprep.mubr.f32.mxu0 0.0
      %1093 = vmatmul.mubr.f32.gmra.mrb[0].mxu0 %v1003
      %v1094 = vpop.f32.mrb[0].mxu0
      %v1095 = vadd.f32 0.0, %v1094
      %v1096 = vpop.f32.mrb[0].mxu0
      %1097 = vmatprep.mubr.f32.mxu0 0.0
      %1098 = vmatmul.mubr.f32.gmra.mrb[0].mxu0 %v1005
      %v1099 = vpop.f32.mrb[0].mxu0
      %v1100 = vadd.f32 0.0, %v1099
      %v1101 = vpop.f32.mrb[0].mxu0
      %1102 = vmatprep.mubr.f32.mxu0 0.0
      %1103 = vmatmul.mubr.f32.gmra.mrb[0].mxu0 %v1007
      %v1104 = vpop.f32.mrb[0].mxu0
      %v1105 = vadd.f32 0.0, %v1104
      %v1106 = vpop.f32.mrb[0].mxu0
      %1107 = vmatprep.mubr.f32.mxu0 0.0
      %1108 = vmatmul.mubr.f32.gmra.mrb[0].mxu0 %v1009
      %v1109 = vpop.f32.mrb[0].mxu0
      %v1110 = vadd.f32 0.0, %v1109
      %v1111 = vpop.f32.mrb[0].mxu0
      %1112 = vmatprep.mubr.f32.mxu0 0.0
      %1113 = vmatmul.mubr.f32.gmra.mrb[0].mxu0 %v1011
      %v1114 = vpop.f32.mrb[0].mxu0
      %v1115 = vadd.f32 0.0, %v1114
      %v1116 = vpop.f32.mrb[0].mxu0
      %1117 = vdwg.mxu0
      %v1118 = vadd.f32 %v962, %v1080
      %v1119 = vadd.f32 %v963, %v1085
      %v1120 = vadd.f32 %v964, %v1090
      %v1121 = vadd.f32 %v965, %v1095
      %v1122 = vadd.f32 %v966, %v1100
      %v1123 = vadd.f32 %v967, %v1105
      %v1124 = vadd.f32 %v968, %v1110
      %v1125 = vadd.f32 %v969, %v1115
      %s1126 = scalar_lea.vmem [#allocation2], 32
      %v1127 = vld [vmem:[%s1126] sm:$0xff]
      %v1128 = vld [vmem:[%s1126 + $0x8] sm:$0x3]
      %v1129 = vld [vmem:[%s1126 + $0x10] sm:$0xff]
      %v1130 = vld [vmem:[%s1126 + $0x18] sm:$0x3]
      %v1131 = vld [vmem:[%s1126 + $0x20] sm:$0xff]
      %v1132 = vld [vmem:[%s1126 + $0x28] sm:$0x3]
      %v1133 = vld [vmem:[%s1126 + $0x30] sm:$0xff]
      %v1134 = vld [vmem:[%s1126 + $0x38] sm:$0x3]
      %v1135 = vld [vmem:[%s1126 + $0x40] sm:$0xff]
      %v1136 = vld [vmem:[%s1126 + $0x48] sm:$0x3]
      %v1137 = vld [vmem:[%s1126 + $0x50] sm:$0xff]
      %v1138 = vld [vmem:[%s1126 + $0x58] sm:$0x3]
      %v1139 = vld [vmem:[%s1126 + $0x60] sm:$0xff]
      %v1140 = vld [vmem:[%s1126 + $0x68] sm:$0x3]
      %v1141 = vld [vmem:[%s1126 + $0x70] sm:$0xff]
      %v1142 = vld [vmem:[%s1126 + $0x78] sm:$0x3]
      %s1143 = scalar_lea.vmem %s1, 96
      %v1144 = vld [vmem:[%s1143] sm:$0xff]
      %v1145 = vld [vmem:[%s1143 + $0x8] sm:$0xff]
      %v1147 = vsel %vm144, %v1127, 0
      %v1150 = vsel %vm144, %v1129, 0
      %v1153 = vsel %vm144, %v1131, 0
      %v1156 = vsel %vm144, %v1133, 0
      %v1159 = vsel %vm144, %v1135, 0
      %v1162 = vsel %vm144, %v1137, 0
      %v1165 = vsel %vm144, %v1139, 0
      %v1168 = vsel %vm144, %v1141, 0
      %1170 = vmatprep.subr.mxu0 0.0
      %1171 = vmatpush1.msra.mxu0 %v1144
      %1172 = vmatprep.subr.mxu0 0.0
      %1173 = vmatpush1.msra.mxu0 %v1145
      %1174 = vmatprep.subr.mxu0 0.0
      %1175 = vmatpush1.msra.mxu0 0.0
      %1176 = vmatprep.subr.mxu0 0.0
      %1177 = vmatpush1.msra.mxu0 0.0
      %1178 = vmatprep.subr.mxu0 0.0
      %1179 = vmatpush1.msra.mxu0 0.0
      %1180 = vmatprep.subr.mxu0 0.0
      %1181 = vmatpush1.msra.mxu0 0.0
      %1182 = vmatprep.subr.mxu0 0.0
      %1183 = vmatpush1.msra.mxu0 0.0
      %1184 = vmatprep.subr.mxu0 0.0
      %1185 = vmatpush1.msra.mxu0 0.0
      %1186 = vmatprep.subr.mxu0 0.0
      %1187 = vmatpush1.msra.mxu0 0.0
      %1188 = vmatprep.subr.mxu0 0.0
      %1189 = vmatpush1.msra.mxu0 0.0
      %1190 = vmatprep.subr.mxu0 0.0
      %1191 = vmatpush1.msra.mxu0 0.0
      %1192 = vmatprep.subr.mxu0 0.0
      %1193 = vmatpush1.msra.mxu0 0.0
      %1194 = vmatprep.subr.mxu0 0.0
      %1195 = vmatpush1.msra.mxu0 0.0
      %1196 = vmatprep.subr.mxu0 0.0
      %1197 = vmatpush1.msra.mxu0 0.0
      %1198 = vmatprep.subr.mxu0 0.0
      %1199 = vmatpush1.msra.mxu0 0.0
      %1200 = vmatprep.subr.mxu0 0.0
      %1201 = vmatpush1.msra.mxu0 0.0
      %1202 = vmatprep.subr.mxu0 0.0
      %1203 = vmatpush1.msra.mxu0 0.0
      %1204 = vmatprep.subr.mxu0 0.0
      %1205 = vmatpush1.msra.mxu0 0.0
      %1206 = vmatprep.subr.mxu0 0.0
      %1207 = vmatpush1.msra.mxu0 0.0
      %1208 = vmatprep.subr.mxu0 0.0
      %1209 = vmatpush1.msra.mxu0 0.0
      %1210 = vmatprep.subr.mxu0 0.0
      %1211 = vmatpush1.msra.mxu0 0.0
      %1212 = vmatprep.subr.mxu0 0.0
      %1213 = vmatpush1.msra.mxu0 0.0
      %1214 = vmatprep.subr.mxu0 0.0
      %1215 = vmatpush1.msra.mxu0 0.0
      %1216 = vmatprep.subr.mxu0 0.0
      %1217 = vmatpush1.msra.mxu0 0.0
      %1218 = vmatprep.subr.mxu0 0.0
      %1219 = vmatpush1.msra.mxu0 0.0
      %1220 = vmatprep.subr.mxu0 0.0
      %1221 = vmatpush1.msra.mxu0 0.0
      %1222 = vmatprep.subr.mxu0 0.0
      %1223 = vmatpush1.msra.mxu0 0.0
      %1224 = vmatprep.subr.mxu0 0.0
      %1225 = vmatpush1.msra.mxu0 0.0
      %1226 = vmatprep.subr.mxu0 0.0
      %1227 = vmatpush1.msra.mxu0 0.0
      %1228 = vmatprep.subr.mxu0 0.0
      %1229 = vmatpush1.msra.mxu0 0.0
      %1230 = vmatprep.subr.mxu0 0.0
      %1231 = vmatpush1.msra.mxu0 0.0
      %1232 = vmatprep.subr.mxu0 0.0
      %1233 = vmatpush1.msra.mxu0 0.0
      %1234 = vmatprep.mubr.f32.mxu0 0.0
      %1235 = vmatmul.mubr.f32.gmra.mrb[0].mxu0 %v1147
      %v1236 = vpop.f32.mrb[0].mxu0
      %v1237 = vadd.f32 0.0, %v1236
      %v1238 = vpop.f32.mrb[0].mxu0
      %1239 = vmatprep.mubr.f32.mxu0 0.0
      %1240 = vmatmul.mubr.f32.gmra.mrb[0].mxu0 %v1150
      %v1241 = vpop.f32.mrb[0].mxu0
      %v1242 = vadd.f32 0.0, %v1241
      %v1243 = vpop.f32.mrb[0].mxu0
      %1244 = vmatprep.mubr.f32.mxu0 0.0
      %1245 = vmatmul.mubr.f32.gmra.mrb[0].mxu0 %v1153
      %v1246 = vpop.f32.mrb[0].mxu0
      %v1247 = vadd.f32 0.0, %v1246
      %v1248 = vpop.f32.mrb[0].mxu0
      %1249 = vmatprep.mubr.f32.mxu0 0.0
      %1250 = vmatmul.mubr.f32.gmra.mrb[0].mxu0 %v1156
      %v1251 = vpop.f32.mrb[0].mxu0
      %v1252 = vadd.f32 0.0, %v1251
      %v1253 = vpop.f32.mrb[0].mxu0
      %1254 = vmatprep.mubr.f32.mxu0 0.0
      %1255 = vmatmul.mubr.f32.gmra.mrb[0].mxu0 %v1159
      %v1256 = vpop.f32.mrb[0].mxu0
      %v1257 = vadd.f32 0.0, %v1256
      %v1258 = vpop.f32.mrb[0].mxu0
      %1259 = vmatprep.mubr.f32.mxu0 0.0
      %1260 = vmatmul.mubr.f32.gmra.mrb[0].mxu0 %v1162
      %v1261 = vpop.f32.mrb[0].mxu0
      %v1262 = vadd.f32 0.0, %v1261
      %v1263 = vpop.f32.mrb[0].mxu0
      %1264 = vmatprep.mubr.f32.mxu0 0.0
      %1265 = vmatmul.mubr.f32.gmra.mrb[0].mxu0 %v1165
      %v1266 = vpop.f32.mrb[0].mxu0
      %v1267 = vadd.f32 0.0, %v1266
      %v1268 = vpop.f32.mrb[0].mxu0
      %1269 = vmatprep.mubr.f32.mxu0 0.0
      %1270 = vmatmul.mubr.f32.gmra.mrb[0].mxu0 %v1168
      %v1271 = vpop.f32.mrb[0].mxu0
      %v1272 = vadd.f32 0.0, %v1271
      %v1273 = vpop.f32.mrb[0].mxu0
      %1274 = vdwg.mxu0
      %v1275 = vadd.f32 %v1118, %v1237
      %v1276 = vadd.f32 %v1119, %v1242
      %v1277 = vadd.f32 %v1120, %v1247
      %v1278 = vadd.f32 %v1121, %v1252
      %v1279 = vadd.f32 %v1122, %v1257
      %v1280 = vadd.f32 %v1123, %v1262
      %v1281 = vadd.f32 %v1124, %v1267
      %v1282 = vadd.f32 %v1125, %v1272
      %v1291 = vrot.slane %v1127, 1
      %v1292 = vrot.slane %v1128, 1
      %v1293 = vsel %vm223, %v1291, %v1292
      %v1294 = vrot.slane %v1129, 1
      %v1295 = vrot.slane %v1130, 1
      %v1296 = vsel %vm223, %v1294, %v1295
      %v1297 = vrot.slane %v1131, 1
      %v1298 = vrot.slane %v1132, 1
      %v1299 = vsel %vm223, %v1297, %v1298
      %v1300 = vrot.slane %v1133, 1
      %v1301 = vrot.slane %v1134, 1
      %v1302 = vsel %vm223, %v1300, %v1301
      %v1303 = vrot.slane %v1135, 1
      %v1304 = vrot.slane %v1136, 1
      %v1305 = vsel %vm223, %v1303, %v1304
      %v1306 = vrot.slane %v1137, 1
      %v1307 = vrot.slane %v1138, 1
      %v1308 = vsel %vm223, %v1306, %v1307
      %v1309 = vrot.slane %v1139, 1
      %v1310 = vrot.slane %v1140, 1
      %v1311 = vsel %vm223, %v1309, %v1310
      %v1312 = vrot.slane %v1141, 1
      %v1313 = vrot.slane %v1142, 1
      %v1314 = vsel %vm223, %v1312, %v1313
      %s1315 = scalar_lea.vmem %s1, 112
      %v1316 = vld [vmem:[%s1315] sm:$0xff]
      %v1317 = vld [vmem:[%s1315 + $0x8] sm:$0xff]
      %v1318 = vsel %vm144, %v1293, 0
      %v1320 = vsel %vm144, %v1296, 0
      %v1322 = vsel %vm144, %v1299, 0
      %v1324 = vsel %vm144, %v1302, 0
      %v1326 = vsel %vm144, %v1305, 0
      %v1328 = vsel %vm144, %v1308, 0
      %v1330 = vsel %vm144, %v1311, 0
      %v1332 = vsel %vm144, %v1314, 0
      %1334 = vmatprep.subr.mxu0 0.0
      %1335 = vmatpush1.msra.mxu0 %v1316
      %1336 = vmatprep.subr.mxu0 0.0
      %1337 = vmatpush1.msra.mxu0 %v1317
      %1338 = vmatprep.subr.mxu0 0.0
      %1339 = vmatpush1.msra.mxu0 0.0
      %1340 = vmatprep.subr.mxu0 0.0
      %1341 = vmatpush1.msra.mxu0 0.0
      %1342 = vmatprep.subr.mxu0 0.0
      %1343 = vmatpush1.msra.mxu0 0.0
      %1344 = vmatprep.subr.mxu0 0.0
      %1345 = vmatpush1.msra.mxu0 0.0
      %1346 = vmatprep.subr.mxu0 0.0
      %1347 = vmatpush1.msra.mxu0 0.0
      %1348 = vmatprep.subr.mxu0 0.0
      %1349 = vmatpush1.msra.mxu0 0.0
      %1350 = vmatprep.subr.mxu0 0.0
      %1351 = vmatpush1.msra.mxu0 0.0
      %1352 = vmatprep.subr.mxu0 0.0
      %1353 = vmatpush1.msra.mxu0 0.0
      %1354 = vmatprep.subr.mxu0 0.0
      %1355 = vmatpush1.msra.mxu0 0.0
      %1356 = vmatprep.subr.mxu0 0.0
      %1357 = vmatpush1.msra.mxu0 0.0
      %1358 = vmatprep.subr.mxu0 0.0
      %1359 = vmatpush1.msra.mxu0 0.0
      %1360 = vmatprep.subr.mxu0 0.0
      %1361 = vmatpush1.msra.mxu0 0.0
      %1362 = vmatprep.subr.mxu0 0.0
      %1363 = vmatpush1.msra.mxu0 0.0
      %1364 = vmatprep.subr.mxu0 0.0
      %1365 = vmatpush1.msra.mxu0 0.0
      %1366 = vmatprep.subr.mxu0 0.0
      %1367 = vmatpush1.msra.mxu0 0.0
      %1368 = vmatprep.subr.mxu0 0.0
      %1369 = vmatpush1.msra.mxu0 0.0
      %1370 = vmatprep.subr.mxu0 0.0
      %1371 = vmatpush1.msra.mxu0 0.0
      %1372 = vmatprep.subr.mxu0 0.0
      %1373 = vmatpush1.msra.mxu0 0.0
      %1374 = vmatprep.subr.mxu0 0.0
      %1375 = vmatpush1.msra.mxu0 0.0
      %1376 = vmatprep.subr.mxu0 0.0
      %1377 = vmatpush1.msra.mxu0 0.0
      %1378 = vmatprep.subr.mxu0 0.0
      %1379 = vmatpush1.msra.mxu0 0.0
      %1380 = vmatprep.subr.mxu0 0.0
      %1381 = vmatpush1.msra.mxu0 0.0
      %1382 = vmatprep.subr.mxu0 0.0
      %1383 = vmatpush1.msra.mxu0 0.0
      %1384 = vmatprep.subr.mxu0 0.0
      %1385 = vmatpush1.msra.mxu0 0.0
      %1386 = vmatprep.subr.mxu0 0.0
      %1387 = vmatpush1.msra.mxu0 0.0
      %1388 = vmatprep.subr.mxu0 0.0
      %1389 = vmatpush1.msra.mxu0 0.0
      %1390 = vmatprep.subr.mxu0 0.0
      %1391 = vmatpush1.msra.mxu0 0.0
      %1392 = vmatprep.subr.mxu0 0.0
      %1393 = vmatpush1.msra.mxu0 0.0
      %1394 = vmatprep.subr.mxu0 0.0
      %1395 = vmatpush1.msra.mxu0 0.0
      %1396 = vmatprep.subr.mxu0 0.0
      %1397 = vmatpush1.msra.mxu0 0.0
      %1398 = vmatprep.mubr.f32.mxu0 0.0
      %1399 = vmatmul.mubr.f32.gmra.mrb[0].mxu0 %v1318
      %v1400 = vpop.f32.mrb[0].mxu0
      %v1401 = vadd.f32 0.0, %v1400
      %v1402 = vpop.f32.mrb[0].mxu0
      %1403 = vmatprep.mubr.f32.mxu0 0.0
      %1404 = vmatmul.mubr.f32.gmra.mrb[0].mxu0 %v1320
      %v1405 = vpop.f32.mrb[0].mxu0
      %v1406 = vadd.f32 0.0, %v1405
      %v1407 = vpop.f32.mrb[0].mxu0
      %1408 = vmatprep.mubr.f32.mxu0 0.0
      %1409 = vmatmul.mubr.f32.gmra.mrb[0].mxu0 %v1322
      %v1410 = vpop.f32.mrb[0].mxu0
      %v1411 = vadd.f32 0.0, %v1410
      %v1412 = vpop.f32.mrb[0].mxu0
      %1413 = vmatprep.mubr.f32.mxu0 0.0
      %1414 = vmatmul.mubr.f32.gmra.mrb[0].mxu0 %v1324
      %v1415 = vpop.f32.mrb[0].mxu0
      %v1416 = vadd.f32 0.0, %v1415
      %v1417 = vpop.f32.mrb[0].mxu0
      %1418 = vmatprep.mubr.f32.mxu0 0.0
      %1419 = vmatmul.mubr.f32.gmra.mrb[0].mxu0 %v1326
      %v1420 = vpop.f32.mrb[0].mxu0
      %v1421 = vadd.f32 0.0, %v1420
      %v1422 = vpop.f32.mrb[0].mxu0
      %1423 = vmatprep.mubr.f32.mxu0 0.0
      %1424 = vmatmul.mubr.f32.gmra.mrb[0].mxu0 %v1328
      %v1425 = vpop.f32.mrb[0].mxu0
      %v1426 = vadd.f32 0.0, %v1425
      %v1427 = vpop.f32.mrb[0].mxu0
      %1428 = vmatprep.mubr.f32.mxu0 0.0
      %1429 = vmatmul.mubr.f32.gmra.mrb[0].mxu0 %v1330
      %v1430 = vpop.f32.mrb[0].mxu0
      %v1431 = vadd.f32 0.0, %v1430
      %v1432 = vpop.f32.mrb[0].mxu0
      %1433 = vmatprep.mubr.f32.mxu0 0.0
      %1434 = vmatmul.mubr.f32.gmra.mrb[0].mxu0 %v1332
      %v1435 = vpop.f32.mrb[0].mxu0
      %v1436 = vadd.f32 0.0, %v1435
      %v1437 = vpop.f32.mrb[0].mxu0
      %1438 = vdwg.mxu0
      %v1439 = vadd.f32 %v1275, %v1401
      %v1440 = vadd.f32 %v1276, %v1406
      %v1441 = vadd.f32 %v1277, %v1411
      %v1442 = vadd.f32 %v1278, %v1416
      %v1443 = vadd.f32 %v1279, %v1421
      %v1444 = vadd.f32 %v1280, %v1426
      %v1445 = vadd.f32 %v1281, %v1431
      %v1446 = vadd.f32 %v1282, %v1436
      %v1447 = vrot.slane %v1127, 2
      %v1448 = vrot.slane %v1128, 2
      %v1449 = vsel %vm493, %v1447, %v1448
      %v1450 = vrot.slane %v1129, 2
      %v1451 = vrot.slane %v1130, 2
      %v1452 = vsel %vm493, %v1450, %v1451
      %v1453 = vrot.slane %v1131, 2
      %v1454 = vrot.slane %v1132, 2
      %v1455 = vsel %vm493, %v1453, %v1454
      %v1456 = vrot.slane %v1133, 2
      %v1457 = vrot.slane %v1134, 2
      %v1458 = vsel %vm493, %v1456, %v1457
      %v1459 = vrot.slane %v1135, 2
      %v1460 = vrot.slane %v1136, 2
      %v1461 = vsel %vm493, %v1459, %v1460
      %v1462 = vrot.slane %v1137, 2
      %v1463 = vrot.slane %v1138, 2
      %v1464 = vsel %vm493, %v1462, %v1463
      %v1465 = vrot.slane %v1139, 2
      %v1466 = vrot.slane %v1140, 2
      %v1467 = vsel %vm493, %v1465, %v1466
      %v1468 = vrot.slane %v1141, 2
      %v1469 = vrot.slane %v1142, 2
      %v1470 = vsel %vm493, %v1468, %v1469
      %s1471 = scalar_lea.vmem %s1, 128
      %v1472 = vld [vmem:[%s1471] sm:$0xff]
      %v1473 = vld [vmem:[%s1471 + $0x8] sm:$0xff]
      %v1474 = vsel %vm144, %v1449, 0
      %v1476 = vsel %vm144, %v1452, 0
      %v1478 = vsel %vm144, %v1455, 0
      %v1480 = vsel %vm144, %v1458, 0
      %v1482 = vsel %vm144, %v1461, 0
      %v1484 = vsel %vm144, %v1464, 0
      %v1486 = vsel %vm144, %v1467, 0
      %v1488 = vsel %vm144, %v1470, 0
      %1490 = vmatprep.subr.mxu0 0.0
      %1491 = vmatpush1.msra.mxu0 %v1472
      %1492 = vmatprep.subr.mxu0 0.0
      %1493 = vmatpush1.msra.mxu0 %v1473
      %1494 = vmatprep.subr.mxu0 0.0
      %1495 = vmatpush1.msra.mxu0 0.0
      %1496 = vmatprep.subr.mxu0 0.0
      %1497 = vmatpush1.msra.mxu0 0.0
      %1498 = vmatprep.subr.mxu0 0.0
      %1499 = vmatpush1.msra.mxu0 0.0
      %1500 = vmatprep.subr.mxu0 0.0
      %1501 = vmatpush1.msra.mxu0 0.0
      %1502 = vmatprep.subr.mxu0 0.0
      %1503 = vmatpush1.msra.mxu0 0.0
      %1504 = vmatprep.subr.mxu0 0.0
      %1505 = vmatpush1.msra.mxu0 0.0
      %1506 = vmatprep.subr.mxu0 0.0
      %1507 = vmatpush1.msra.mxu0 0.0
      %1508 = vmatprep.subr.mxu0 0.0
      %1509 = vmatpush1.msra.mxu0 0.0
      %1510 = vmatprep.subr.mxu0 0.0
      %1511 = vmatpush1.msra.mxu0 0.0
      %1512 = vmatprep.subr.mxu0 0.0
      %1513 = vmatpush1.msra.mxu0 0.0
      %1514 = vmatprep.subr.mxu0 0.0
      %1515 = vmatpush1.msra.mxu0 0.0
      %1516 = vmatprep.subr.mxu0 0.0
      %1517 = vmatpush1.msra.mxu0 0.0
      %1518 = vmatprep.subr.mxu0 0.0
      %1519 = vmatpush1.msra.mxu0 0.0
      %1520 = vmatprep.subr.mxu0 0.0
      %1521 = vmatpush1.msra.mxu0 0.0
      %1522 = vmatprep.subr.mxu0 0.0
      %1523 = vmatpush1.msra.mxu0 0.0
      %1524 = vmatprep.subr.mxu0 0.0
      %1525 = vmatpush1.msra.mxu0 0.0
      %1526 = vmatprep.subr.mxu0 0.0
      %1527 = vmatpush1.msra.mxu0 0.0
      %1528 = vmatprep.subr.mxu0 0.0
      %1529 = vmatpush1.msra.mxu0 0.0
      %1530 = vmatprep.subr.mxu0 0.0
      %1531 = vmatpush1.msra.mxu0 0.0
      %1532 = vmatprep.subr.mxu0 0.0
      %1533 = vmatpush1.msra.mxu0 0.0
      %1534 = vmatprep.subr.mxu0 0.0
      %1535 = vmatpush1.msra.mxu0 0.0
      %1536 = vmatprep.subr.mxu0 0.0
      %1537 = vmatpush1.msra.mxu0 0.0
      %1538 = vmatprep.subr.mxu0 0.0
      %1539 = vmatpush1.msra.mxu0 0.0
      %1540 = vmatprep.subr.mxu0 0.0
      %1541 = vmatpush1.msra.mxu0 0.0
      %1542 = vmatprep.subr.mxu0 0.0
      %1543 = vmatpush1.msra.mxu0 0.0
      %1544 = vmatprep.subr.mxu0 0.0
      %1545 = vmatpush1.msra.mxu0 0.0
      %1546 = vmatprep.subr.mxu0 0.0
      %1547 = vmatpush1.msra.mxu0 0.0
      %1548 = vmatprep.subr.mxu0 0.0
      %1549 = vmatpush1.msra.mxu0 0.0
      %1550 = vmatprep.subr.mxu0 0.0
      %1551 = vmatpush1.msra.mxu0 0.0
      %1552 = vmatprep.subr.mxu0 0.0
      %1553 = vmatpush1.msra.mxu0 0.0
      %1554 = vmatprep.mubr.f32.mxu0 0.0
      %1555 = vmatmul.mubr.f32.gmra.mrb[0].mxu0 %v1474
      %v1556 = vpop.f32.mrb[0].mxu0
      %v1557 = vadd.f32 0.0, %v1556
      %v1558 = vpop.f32.mrb[0].mxu0
      %1559 = vmatprep.mubr.f32.mxu0 0.0
      %1560 = vmatmul.mubr.f32.gmra.mrb[0].mxu0 %v1476
      %v1561 = vpop.f32.mrb[0].mxu0
      %v1562 = vadd.f32 0.0, %v1561
      %v1563 = vpop.f32.mrb[0].mxu0
      %1564 = vmatprep.mubr.f32.mxu0 0.0
      %1565 = vmatmul.mubr.f32.gmra.mrb[0].mxu0 %v1478
      %v1566 = vpop.f32.mrb[0].mxu0
      %v1567 = vadd.f32 0.0, %v1566
      %v1568 = vpop.f32.mrb[0].mxu0
      %1569 = vmatprep.mubr.f32.mxu0 0.0
      %1570 = vmatmul.mubr.f32.gmra.mrb[0].mxu0 %v1480
      %v1571 = vpop.f32.mrb[0].mxu0
      %v1572 = vadd.f32 0.0, %v1571
      %v1573 = vpop.f32.mrb[0].mxu0
      %1574 = vmatprep.mubr.f32.mxu0 0.0
      %1575 = vmatmul.mubr.f32.gmra.mrb[0].mxu0 %v1482
      %v1576 = vpop.f32.mrb[0].mxu0
      %v1577 = vadd.f32 0.0, %v1576
      %v1578 = vpop.f32.mrb[0].mxu0
      %1579 = vmatprep.mubr.f32.mxu0 0.0
      %1580 = vmatmul.mubr.f32.gmra.mrb[0].mxu0 %v1484
      %v1581 = vpop.f32.mrb[0].mxu0
      %v1582 = vadd.f32 0.0, %v1581
      %v1583 = vpop.f32.mrb[0].mxu0
      %1584 = vmatprep.mubr.f32.mxu0 0.0
      %1585 = vmatmul.mubr.f32.gmra.mrb[0].mxu0 %v1486
      %v1586 = vpop.f32.mrb[0].mxu0
      %v1587 = vadd.f32 0.0, %v1586
      %v1588 = vpop.f32.mrb[0].mxu0
      %1589 = vmatprep.mubr.f32.mxu0 0.0
      %1590 = vmatmul.mubr.f32.gmra.mrb[0].mxu0 %v1488
      %v1591 = vpop.f32.mrb[0].mxu0
      %v1592 = vadd.f32 0.0, %v1591
      %v1593 = vpop.f32.mrb[0].mxu0
      %1594 = vdwg.mxu0
      %v1595 = vadd.f32 %v1439, %v1557
      %v1596 = vadd.f32 %v1440, %v1562
      %v1597 = vadd.f32 %v1441, %v1567
      %v1598 = vadd.f32 %v1442, %v1572
      %v1599 = vadd.f32 %v1443, %v1577
      %v1600 = vadd.f32 %v1444, %v1582
      %v1601 = vadd.f32 %v1445, %v1587
      %v1602 = vadd.f32 %v1446, %v1592
      %vm1603 = vcmask 64512
      %1604 = vst.msk [vmem:[%s143] sm:$0xff] %vm1603, %v1595
      %1605 = vst.msk [vmem:[%s143 + $0x8] sm:$0xff] %vm1603, %v1596
      %1606 = vst.msk [vmem:[%s143 + $0x10] sm:$0xff] %vm1603, %v1597
      %1607 = vst.msk [vmem:[%s143 + $0x18] sm:$0xff] %vm1603, %v1598
      %1608 = vst.msk [vmem:[%s143 + $0x20] sm:$0xff] %vm1603, %v1599
      %1609 = vst.msk [vmem:[%s143 + $0x28] sm:$0xff] %vm1603, %v1600
      %1610 = vst.msk [vmem:[%s143 + $0x30] sm:$0xff] %vm1603, %v1601
      %1611 = vst.msk [vmem:[%s143 + $0x38] sm:$0xff] %vm1603, %v1602
      %p1612 = scmp.lt.s32.totalorder %s13, 1
      %s1613 = scalar_select %p1612, %s13, 1
      %s1614 = smul.addr %s1613, 8
      %s1615 = smul.addr %s1614, 8
      %s1616 = scalar_lea.vmem %s2, %s1615
      // Predicated region
      $region29: #{downsample.1} parent=27 // pred_check
        %p1617 = pneg %p78
      $region30: #{downsample.1} parent=27 // pred_check_branch
        %1619 = sbr.rel (%p1617) target = $region32
      $region31: #{downsample.1} parent=27 // pred_region
        _
      $region32: #{downsample.1} parent=27 // pred_fallthru
        _
    $region28: #{downsample.1} parent=5 // pred_fallthru
      _
    %p1620 = scmp.le.s32.totalorder 2, %s8
    // Predicated region
    $region33: #{downsample.1} parent=5 // pred_check
      %p1621 = pneg %p1620
    $region34: #{downsample.1} parent=5 // pred_check_branch
      %1623 = sbr.rel (%p1621) target = $region36
    $region35: #{downsample.1} parent=5 // pred_region
      %s1624 = ssub.s32 %s8, 2
      // Predicated region
      $region37: #{downsample.1} parent=35 // pred_check
        %p1625 = pneg %p84
      $region38: #{downsample.1} parent=35 // pred_check_branch
        %1627 = sbr.rel (%p1625) target = $region40
      $region39: #{downsample.1} parent=35 // pred_region
        %p1628 = scmp.lt.s32.totalorder %s14, 1
        %s1629 = scalar_select %p1628, %s14, 1
        %s1630 = smul.addr %s1629, 8
        %s1631 = smul.addr %s1630, 8
        %s1632 = scalar_lea.vmem %s2, %s1631
      $region40: #{downsample.1} parent=35 // pred_fallthru
        _
    $region36: #{downsample.1} parent=5 // pred_fallthru
      _
  $region6: #{downsample.1} parent=0 // loop_footer
    %s12 = sadd.s32 1, %s8
  $region7: #{downsample.1} parent=0 // loop_footer_branch
    %7 = sbr.rel target = $region3
  $region8: #{downsample.1} parent=0 // loop_exit
    _

</llo_original>
